<compile_context>
chip_gen: v5e
topology: v5e:2x2
jax: 0.10.0
libtpu: 0.0.40
codegen_flags: <defaults>
</compile_context>

<pallas_src>
import functools

import jax
import jax.numpy as jnp
from jax.experimental import pallas as pl
from jax.experimental.pallas import tpu as pltpu

LANE = 128


def _round_up(x, m):
    return ((x + m - 1) // m) * m


def _choose_tile(n_pad):
    # n_pad is always a multiple of 128; pick bigger tiles for bigger graphs
    # but stay conservative for v7x's 64 MiB VMEM / v5e's 16 MiB scoped default.
    if n_pad % 512 == 0 and n_pad >= 2048:
        return 512
    if n_pad % 256 == 0 and n_pad >= 1024:
        return 256
    return 128


# ---------------------------------------------------------------------------
# Pallas kernel: one fused SAGEConv(mean) layer
#   agg_i  = sum_k A_norm[i,k] @ H[k]              (f32 accumulator, width f_in)
#   out_i  = H[i] @ W_self + agg_i @ W_neigh + b   [+ ReLU]         (finalize)
#   optionally fused epilogue (edge-predictor per-node halves):
#   proj_u = out @ Wp_u + bp ;  proj_v = out @ Wp_v
#
# Grid: (N_pad // tile, N_pad // tile)
#   axis 0 (i): output row tiles          -> "parallel" (shards across TCs)
#   axis 1 (k): adjacency reduction tiles -> "arbitrary" (VMEM f32 accumulator)
# ---------------------------------------------------------------------------
def _sage_kernel(*refs, apply_relu, project):
    if project:
        (a_ref, hn_ref, hs_ref, ws_ref, wn_ref, b_ref,
         wpu_ref, wpv_ref, bp_ref,
         out_ref, pu_ref, pv_ref, acc_ref) = refs
    else:
        (a_ref, hn_ref, hs_ref, ws_ref, wn_ref, b_ref,
         out_ref, acc_ref) = refs

    k = pl.program_id(1)

    @pl.when(k == 0)
    def _init():
        acc_ref[...] = jnp.zeros_like(acc_ref)

    # Neighbor-mean aggregation for this (i, k) tile, accumulated in f32 at
    # the *input* feature width.  The f_in x f_out projection by W_neigh is
    # applied once per output row tile in the finalize branch, so no matmul
    # work is repeated across the k sweep.
    acc_ref[...] += jnp.dot(a_ref[...], hn_ref[...],
                            preferred_element_type=jnp.float32)

    # Finalize: project aggregate + self term, bias (+ ReLU), lane-dense store,
    # optional fused per-node predictor projections.
    @pl.when(k == pl.num_programs(1) - 1)
    def _finalize():
        neigh = jnp.dot(acc_ref[...].astype(jnp.bfloat16), wn_ref[...],
                        preferred_element_type=jnp.float32)
        self_t = jnp.dot(hs_ref[...], ws_ref[...],
                         preferred_element_type=jnp.float32)
        out = neigh + self_t + b_ref[...]
        if apply_relu:
            out = jnp.maximum(out, 0.0)
        out_ref[...] = out.astype(out_ref.dtype)
        if project:
            hb = out.astype(jnp.bfloat16)
            pu_ref[...] = (jnp.dot(hb, wpu_ref[...],
                                   preferred_element_type=jnp.float32)
                           + bp_ref[...])
            pv_ref[...] = jnp.dot(hb, wpv_ref[...],
                                  preferred_element_type=jnp.float32)


def sage_layer(a_norm, h, w_self, w_neigh, bias, *, apply_relu,
               project_weights=None):
    """Fused SAGEConv(mean) [+ReLU] [+ edge-predictor node projections]."""
    n_pad = a_norm.shape[0]
    f_in = h.shape[1]
    f_out = w_self.shape[1]
    tile = _choose_tile(n_pad)
    nblk = n_pad // tile
    project = project_weights is not None

    def _resident(arr):
        return pl.BlockSpec(arr.shape, lambda i, k: (0, 0))

    in_specs = [
        pl.BlockSpec((tile, tile), lambda i, k: (i, k)),   # A_norm tile
        pl.BlockSpec((tile, f_in), lambda i, k: (k, 0)),   # H reduction stream
        pl.BlockSpec((tile, f_in), lambda i, k: (i, 0)),   # H self rows (per i)
        _resident(w_self), _resident(w_neigh), _resident(bias),
    ]
    args = [a_norm, h, h, w_self, w_neigh, bias]
    out_shapes = [jax.ShapeDtypeStruct((n_pad, f_out), jnp.bfloat16)]
    out_specs = [pl.BlockSpec((tile, f_out), lambda i, k: (i, 0))]

    c = 0
    if project:
        wpu, wpv, bp = project_weights
        c = wpu.shape[1]
        in_specs += [_resident(wpu), _resident(wpv), _resident(bp)]
        args += [wpu, wpv, bp]
        out_shapes += [jax.ShapeDtypeStruct((n_pad, c), jnp.float32)] * 2
        out_specs += [pl.BlockSpec((tile, c), lambda i, k: (i, 0))] * 2

    # Advisory cost estimate for XLA scheduling around the kernel.
    flops = (2 * n_pad * n_pad * f_in           # A @ H aggregation
             + 4 * n_pad * f_in * f_out         # self + neigh projections
             + (4 * n_pad * f_out * c if project else 0))
    bytes_accessed = (2 * n_pad * n_pad                 # A_norm (bf16), once
                      + 2 * n_pad * f_in * (nblk + 1)   # H stream + self rows
                      + 2 * n_pad * f_out               # output
                      + (8 * n_pad * c if project else 0))

    kernel = functools.partial(_sage_kernel, apply_relu=apply_relu,
                               project=project)

    return pl.pallas_call(
        kernel,
        grid=(nblk, nblk),
        in_specs=in_specs,
        out_specs=tuple(out_specs) if project else out_specs[0],
        out_shape=tuple(out_shapes) if project else out_shapes[0],
        scratch_shapes=[pltpu.VMEM((tile, f_in), jnp.float32)],
        compiler_params=pltpu.CompilerParams(
            dimension_semantics=("parallel", "arbitrary"),
            vmem_limit_bytes=32 * 1024 * 1024),
        cost_estimate=pl.CostEstimate(flops=flops, transcendentals=0,
                                      bytes_accessed=bytes_accessed),
    )(*args)


# ---------------------------------------------------------------------------
# Plain-JAX glue: params, padding, graph preprocessing, edge gather.
# ---------------------------------------------------------------------------
def init_params(key, in_features, hidden_features, out_features, out_classes):
    ks = jax.random.split(key, 7)
    s = 0.1

    def lin(k, d_in, d_out):
        return s * jax.random.normal(k, (d_in, d_out), jnp.float32)

    return {
        # SAGEConv 1
        "w_self1": lin(ks[0], in_features, hidden_features),
        "w_neigh1": lin(ks[1], in_features, hidden_features),
        "b1": jnp.zeros((hidden_features,), jnp.float32),
        # SAGEConv 2
        "w_self2": lin(ks[2], hidden_features, out_features),
        "w_neigh2": lin(ks[3], hidden_features, out_features),
        "b2": jnp.zeros((out_features,), jnp.float32),
        # MLPPredictor: Linear(2*out_features, out_classes), W split column-wise
        "w_pred_u": lin(ks[4], out_features, out_classes),
        "w_pred_v": lin(ks[5], out_features, out_classes),
        "b_pred": s * jax.random.normal(ks[6], (out_classes,), jnp.float32),
    }


def _pad2(a, rows, cols, dtype=None):
    out = jnp.pad(a, ((0, rows - a.shape[0]), (0, cols - a.shape[1])))
    return out.astype(dtype) if dtype is not None else out


def build_norm_adjacency(src, dst, n_pad):
    """Dense row-normalized in-adjacency: A[v, u] = (#edges u->v) / in_deg(v)."""
    a = jnp.zeros((n_pad, n_pad), jnp.float32).at[dst, src].add(1.0)
    deg = jnp.maximum(jnp.sum(a, axis=1, keepdims=True), 1.0)  # DGL mean agg
    return (a / deg).astype(jnp.bfloat16)


@jax.jit
def model_forward(params, x, src, dst):
    n, f_in = x.shape
    hid = params["w_self1"].shape[1]
    f_out = params["w_self2"].shape[1]
    n_cls = params["w_pred_u"].shape[1]

    n_pad = _round_up(n, 128)
    f_in_p = _round_up(f_in, LANE)
    hid_p = _round_up(hid, LANE)
    f_out_p = _round_up(f_out, LANE)
    c_p = _round_up(n_cls, LANE)

    # Padding / casting / adjacency build = plain-JAX glue.
    a_norm = build_norm_adjacency(src, dst, n_pad)
    xb = _pad2(x, n_pad, f_in_p, jnp.bfloat16)

    ws1 = _pad2(params["w_self1"], f_in_p, hid_p, jnp.bfloat16)
    wn1 = _pad2(params["w_neigh1"], f_in_p, hid_p, jnp.bfloat16)
    b1 = _pad2(params["b1"][None, :], 1, hid_p)
    ws2 = _pad2(params["w_self2"], hid_p, f_out_p, jnp.bfloat16)
    wn2 = _pad2(params["w_neigh2"], hid_p, f_out_p, jnp.bfloat16)
    b2 = _pad2(params["b2"][None, :], 1, f_out_p)
    wpu = _pad2(params["w_pred_u"], f_out_p, c_p, jnp.bfloat16)
    wpv = _pad2(params["w_pred_v"], f_out_p, c_p, jnp.bfloat16)
    bp = _pad2(params["b_pred"][None, :], 1, c_p)

    # SAGE layer 1 (+ ReLU)
    h = sage_layer(a_norm, xb, ws1, wn1, b1, apply_relu=True)
    # SAGE layer 2, with the edge predictor's per-node projections fused in.
    _, proj_u, proj_v = sage_layer(a_norm, h, ws2, wn2, b2, apply_relu=False,
                                   project_weights=(wpu, wpv, bp))
    # Edge scores: gather tiny (E, C_pad) rows and add (predictor bias already
    # folded into proj_u inside the kernel) — plain-JAX glue.
    scores = proj_u[src] + proj_v[dst]
    return scores[:, :n_cls]


# ---------------------------------------------------------------------------
# Pure-JAX (f32) reference for a sanity check.
# ---------------------------------------------------------------------------
def reference_forward(params, x, src, dst):
    n = x.shape[0]
    a = jnp.zeros((n, n), jnp.float32).at[dst, src].add(1.0)
    deg = jnp.maximum(jnp.sum(a, axis=1, keepdims=True), 1.0)
    a = a / deg

    def conv(h, ws, wn, b):
        return h @ ws + (a @ h) @ wn + b

    h = jax.nn.relu(conv(x, params["w_self1"], params["w_neigh1"], params["b1"]))
    h = conv(h, params["w_self2"], params["w_neigh2"], params["b2"])
    return (h[src] @ params["w_pred_u"] + h[dst] @ params["w_pred_v"]
            + params["b_pred"])


# ---------------------------------------------------------------------------
# Demo
# ---------------------------------------------------------------------------
if __name__ == "__main__":
    in_features, hidden_features, out_features, out_classes = 8, 16, 16, 4
    num_nodes, num_edges = 200, 64   # pads to N_pad=256 -> 2x2 grid of 128 tiles

    key = jax.random.PRNGKey(0)
    k_x, k_src, k_dst, k_params = jax.random.split(key, 4)

    x = jax.random.normal(k_x, (num_nodes, in_features), jnp.float32)
    src = jax.random.randint(k_src, (num_edges,), 0, num_nodes)
    dst = jax.random.randint(k_dst, (num_edges,), 0, num_nodes)

    params = init_params(k_params, in_features, hidden_features,
                         out_features, out_classes)

    scores = model_forward(params, x, src, dst)
    jax.block_until_ready(scores)
    assert scores.shape == (num_edges, out_classes)

    # Loose-tolerance sanity check vs. f32 reference (kernel uses bf16 inputs).
    ref = reference_forward(params, x, src, dst)
    err = jnp.max(jnp.abs(scores - ref))
    assert float(err) < 0.1, f"max abs error too large: {err}"

    print("KERNEL_OK")
</pallas_src>

<mosaic_0001>
module attributes {stable_mosaic.version = 11 : i64} {
  func.func @_sage_kernel(%arg0: i32, %arg1: i32, %arg2: memref<128x128xbf16, #tpu.memory_space<vmem>>, %arg3: memref<128x128xbf16, #tpu.memory_space<vmem>>, %arg4: memref<128x128xbf16, #tpu.memory_space<vmem>>, %arg5: memref<128x128xbf16, #tpu.memory_space<vmem>>, %arg6: memref<128x128xbf16, #tpu.memory_space<vmem>>, %arg7: memref<1x128xf32, #tpu.memory_space<vmem>>, %arg8: memref<128x128xbf16, #tpu.memory_space<vmem>>, %arg9: memref<128x128xf32, #tpu.memory_space<vmem>>) attributes {dimension_semantics = [#tpu.dimension_semantics<parallel>, #tpu.dimension_semantics<arbitrary>], iteration_bounds = array<i64: 2, 2>, scalar_prefetch = 0 : i64, scratch_operands = 1 : i64, tpu.core_type = #tpu.core_type<tc>, window_params = [{transform_indices = @transform_0, window_bounds = array<i64: 128, 128>}, {transform_indices = @transform_1, window_bounds = array<i64: 128, 128>}, {transform_indices = @transform_2, window_bounds = array<i64: 128, 128>}, {pipeline_mode = #tpu.pipeline_mode<synchronous>, transform_indices = @transform_3, window_bounds = array<i64: 128, 128>}, {pipeline_mode = #tpu.pipeline_mode<synchronous>, transform_indices = @transform_4, window_bounds = array<i64: 128, 128>}, {pipeline_mode = #tpu.pipeline_mode<synchronous>, transform_indices = @transform_5, window_bounds = array<i64: 1, 128>}, {transform_indices = @transform_6, window_bounds = array<i64: 128, 128>}]} {
    %c0_i32 = arith.constant 0 : i32
    %0 = arith.cmpi eq, %arg1, %c0_i32 : i32
    %1 = arith.extui %0 : i1 to i32
    %c0_i32_0 = arith.constant 0 : i32
    %2 = arith.cmpi ne, %1, %c0_i32_0 : i32
    scf.if %2 {
      %cst_9 = arith.constant 0.000000e+00 : f32
      %12 = vector.broadcast %cst_9 : f32 to vector<128x128xf32>
      %c0_10 = arith.constant 0 : index
      %c0_11 = arith.constant 0 : index
      %13 = vector.load %arg9[%c0_10, %c0_11] : memref<128x128xf32, #tpu.memory_space<vmem>>, vector<128x128xf32>
      tpu.vector_store %arg9[%c0_10, %c0_11], %12 {strides = array<i32>} : memref<128x128xf32, #tpu.memory_space<vmem>>, vector<128x128xf32>,
    } else {
    }
    %c0 = arith.constant 0 : index
    %c0_1 = arith.constant 0 : index
    %3 = vector.load %arg9[%c0, %c0_1] : memref<128x128xf32, #tpu.memory_space<vmem>>, vector<128x128xf32>
    %c0_2 = arith.constant 0 : index
    %c0_3 = arith.constant 0 : index
    %4 = vector.load %arg2[%c0_2, %c0_3] : memref<128x128xbf16, #tpu.memory_space<vmem>>, vector<128x128xbf16>
    %c0_4 = arith.constant 0 : index
    %c0_5 = arith.constant 0 : index
    %5 = vector.load %arg3[%c0_4, %c0_5] : memref<128x128xbf16, #tpu.memory_space<vmem>>, vector<128x128xbf16>
    %cst = arith.constant dense<0.000000e+00> : vector<128x128xf32>
    %6 = tpu.matmul %4, %5, %cst {dimension_numbers = #tpu.dot_dimension_numbers<[1], [0], [0], [1], [0, 0, 1, 1], [], []>} : vector<128x128xbf16>, vector<128x128xbf16>, vector<128x128xf32> -> vector<128x128xf32>
    %7 = arith.addf %3, %6 : vector<128x128xf32>
    %c0_6 = arith.constant 0 : index
    %c0_7 = arith.constant 0 : index
    %8 = vector.load %arg9[%c0_6, %c0_7] : memref<128x128xf32, #tpu.memory_space<vmem>>, vector<128x128xf32>
    tpu.vector_store %arg9[%c0_6, %c0_7], %7 {strides = array<i32>} : memref<128x128xf32, #tpu.memory_space<vmem>>, vector<128x128xf32>,
    %c1_i32 = arith.constant 1 : i32
    %9 = arith.cmpi eq, %arg1, %c1_i32 : i32
    %10 = arith.extui %9 : i1 to i32
    %c0_i32_8 = arith.constant 0 : i32
    %11 = arith.cmpi ne, %10, %c0_i32_8 : i32
    scf.if %11 {
      %c0_9 = arith.constant 0 : index
      %c0_10 = arith.constant 0 : index
      %12 = vector.load %arg9[%c0_9, %c0_10] : memref<128x128xf32, #tpu.memory_space<vmem>>, vector<128x128xf32>
      %13 = arith.truncf %12 : vector<128x128xf32> to vector<128x128xbf16>
      %c0_11 = arith.constant 0 : index
      %c0_12 = arith.constant 0 : index
      %14 = vector.load %arg6[%c0_11, %c0_12] : memref<128x128xbf16, #tpu.memory_space<vmem>>, vector<128x128xbf16>
      %cst_13 = arith.constant dense<0.000000e+00> : vector<128x128xf32>
      %15 = tpu.matmul %13, %14, %cst_13 {dimension_numbers = #tpu.dot_dimension_numbers<[1], [0], [0], [1], [0, 0, 1, 1], [], []>} : vector<128x128xbf16>, vector<128x128xbf16>, vector<128x128xf32> -> vector<128x128xf32>
      %c0_14 = arith.constant 0 : index
      %c0_15 = arith.constant 0 : index
      %16 = vector.load %arg4[%c0_14, %c0_15] : memref<128x128xbf16, #tpu.memory_space<vmem>>, vector<128x128xbf16>
      %c0_16 = arith.constant 0 : index
      %c0_17 = arith.constant 0 : index
      %17 = vector.load %arg5[%c0_16, %c0_17] : memref<128x128xbf16, #tpu.memory_space<vmem>>, vector<128x128xbf16>
      %cst_18 = arith.constant dense<0.000000e+00> : vector<128x128xf32>
      %18 = tpu.matmul %16, %17, %cst_18 {dimension_numbers = #tpu.dot_dimension_numbers<[1], [0], [0], [1], [0, 0, 1, 1], [], []>} : vector<128x128xbf16>, vector<128x128xbf16>, vector<128x128xf32> -> vector<128x128xf32>
      %19 = arith.addf %15, %18 : vector<128x128xf32>
      %c0_19 = arith.constant 0 : index
      %c0_20 = arith.constant 0 : index
      %20 = vector.load %arg7[%c0_19, %c0_20] : memref<1x128xf32, #tpu.memory_space<vmem>>, vector<1x128xf32>
      %21 = vector.broadcast %20 : vector<1x128xf32> to vector<128x128xf32>
      %22 = arith.addf %19, %21 : vector<128x128xf32>
      %cst_21 = arith.constant 0.000000e+00 : f32
      %23 = vector.broadcast %cst_21 : f32 to vector<128x128xf32>
      %24 = arith.maximumf %22, %23 : vector<128x128xf32>
      %25 = arith.truncf %24 : vector<128x128xf32> to vector<128x128xbf16>
      %c0_22 = arith.constant 0 : index
      %c0_23 = arith.constant 0 : index
      %26 = vector.load %arg8[%c0_22, %c0_23] : memref<128x128xbf16, #tpu.memory_space<vmem>>, vector<128x128xbf16>
      tpu.vector_store %arg8[%c0_22, %c0_23], %25 {strides = array<i32>} : memref<128x128xbf16, #tpu.memory_space<vmem>>, vector<128x128xbf16>,
    } else {
    }
    return
  }
  func.func @transform_0(%arg0: i32, %arg1: i32) -> (i32, i32) {
    %c0_i32 = arith.constant 0 : i32
    return %arg0, %arg1 : i32, i32
  }
  func.func @transform_1(%arg0: i32, %arg1: i32) -> (i32, i32) {
    %c0_i32 = arith.constant 0 : i32
    %c0_i32_0 = arith.constant 0 : i32
    return %arg1, %c0_i32 : i32, i32
  }
  func.func @transform_2(%arg0: i32, %arg1: i32) -> (i32, i32) {
    %c0_i32 = arith.constant 0 : i32
    %c0_i32_0 = arith.constant 0 : i32
    return %arg0, %c0_i32 : i32, i32
  }
  func.func @transform_3(%arg0: i32, %arg1: i32) -> (i32, i32) {
    %c0_i32 = arith.constant 0 : i32
    %c0_i32_0 = arith.constant 0 : i32
    %c0_i32_1 = arith.constant 0 : i32
    return %c0_i32, %c0_i32_0 : i32, i32
  }
  func.func @transform_4(%arg0: i32, %arg1: i32) -> (i32, i32) {
    %c0_i32 = arith.constant 0 : i32
    %c0_i32_0 = arith.constant 0 : i32
    %c0_i32_1 = arith.constant 0 : i32
    return %c0_i32, %c0_i32_0 : i32, i32
  }
  func.func @transform_5(%arg0: i32, %arg1: i32) -> (i32, i32) {
    %c0_i32 = arith.constant 0 : i32
    %c0_i32_0 = arith.constant 0 : i32
    %c0_i32_1 = arith.constant 0 : i32
    return %c0_i32, %c0_i32_0 : i32, i32
  }
  func.func @transform_6(%arg0: i32, %arg1: i32) -> (i32, i32) {
    %c0_i32 = arith.constant 0 : i32
    %c0_i32_0 = arith.constant 0 : i32
    return %arg0, %c0_i32 : i32, i32
  }
}

module attributes {stable_mosaic.version = 11 : i64} {
  func.func @_sage_kernel(%arg0: i32, %arg1: i32, %arg2: memref<128x128xbf16, #tpu.memory_space<vmem>>, %arg3: memref<128x128xbf16, #tpu.memory_space<vmem>>, %arg4: memref<128x128xbf16, #tpu.memory_space<vmem>>, %arg5: memref<128x128xbf16, #tpu.memory_space<vmem>>, %arg6: memref<128x128xbf16, #tpu.memory_space<vmem>>, %arg7: memref<1x128xf32, #tpu.memory_space<vmem>>, %arg8: memref<128x128xbf16, #tpu.memory_space<vmem>>, %arg9: memref<128x128xbf16, #tpu.memory_space<vmem>>, %arg10: memref<1x128xf32, #tpu.memory_space<vmem>>, %arg11: memref<128x128xbf16, #tpu.memory_space<vmem>>, %arg12: memref<128x128xf32, #tpu.memory_space<vmem>>, %arg13: memref<128x128xf32, #tpu.memory_space<vmem>>, %arg14: memref<128x128xf32, #tpu.memory_space<vmem>>) attributes {dimension_semantics = [#tpu.dimension_semantics<parallel>, #tpu.dimension_semantics<arbitrary>], iteration_bounds = array<i64: 2, 2>, scalar_prefetch = 0 : i64, scratch_operands = 1 : i64, tpu.core_type = #tpu.core_type<tc>, window_params = [{transform_indices = @transform_0, window_bounds = array<i64: 128, 128>}, {transform_indices = @transform_1, window_bounds = array<i64: 128, 128>}, {transform_indices = @transform_2, window_bounds = array<i64: 128, 128>}, {pipeline_mode = #tpu.pipeline_mode<synchronous>, transform_indices = @transform_3, window_bounds = array<i64: 128, 128>}, {pipeline_mode = #tpu.pipeline_mode<synchronous>, transform_indices = @transform_4, window_bounds = array<i64: 128, 128>}, {pipeline_mode = #tpu.pipeline_mode<synchronous>, transform_indices = @transform_5, window_bounds = array<i64: 1, 128>}, {pipeline_mode = #tpu.pipeline_mode<synchronous>, transform_indices = @transform_6, window_bounds = array<i64: 128, 128>}, {pipeline_mode = #tpu.pipeline_mode<synchronous>, transform_indices = @transform_7, window_bounds = array<i64: 128, 128>}, {pipeline_mode = #tpu.pipeline_mode<synchronous>, transform_indices = @transform_8, window_bounds = array<i64: 1, 128>}, {transform_indices = @transform_9, window_bounds = array<i64: 128, 128>}, {transform_indices = @transform_10, window_bounds = array<i64: 128, 128>}, {transform_indices = @transform_11, window_bounds = array<i64: 128, 128>}]} {
    %c0_i32 = arith.constant 0 : i32
    %0 = arith.cmpi eq, %arg1, %c0_i32 : i32
    %1 = arith.extui %0 : i1 to i32
    %c0_i32_0 = arith.constant 0 : i32
    %2 = arith.cmpi ne, %1, %c0_i32_0 : i32
    scf.if %2 {
      %cst_9 = arith.constant 0.000000e+00 : f32
      %12 = vector.broadcast %cst_9 : f32 to vector<128x128xf32>
      %c0_10 = arith.constant 0 : index
      %c0_11 = arith.constant 0 : index
      %13 = vector.load %arg14[%c0_10, %c0_11] : memref<128x128xf32, #tpu.memory_space<vmem>>, vector<128x128xf32>
      tpu.vector_store %arg14[%c0_10, %c0_11], %12 {strides = array<i32>} : memref<128x128xf32, #tpu.memory_space<vmem>>, vector<128x128xf32>,
    } else {
    }
    %c0 = arith.constant 0 : index
    %c0_1 = arith.constant 0 : index
    %3 = vector.load %arg14[%c0, %c0_1] : memref<128x128xf32, #tpu.memory_space<vmem>>, vector<128x128xf32>
    %c0_2 = arith.constant 0 : index
    %c0_3 = arith.constant 0 : index
    %4 = vector.load %arg2[%c0_2, %c0_3] : memref<128x128xbf16, #tpu.memory_space<vmem>>, vector<128x128xbf16>
    %c0_4 = arith.constant 0 : index
    %c0_5 = arith.constant 0 : index
    %5 = vector.load %arg3[%c0_4, %c0_5] : memref<128x128xbf16, #tpu.memory_space<vmem>>, vector<128x128xbf16>
    %cst = arith.constant dense<0.000000e+00> : vector<128x128xf32>
    %6 = tpu.matmul %4, %5, %cst {dimension_numbers = #tpu.dot_dimension_numbers<[1], [0], [0], [1], [0, 0, 1, 1], [], []>} : vector<128x128xbf16>, vector<128x128xbf16>, vector<128x128xf32> -> vector<128x128xf32>
    %7 = arith.addf %3, %6 : vector<128x128xf32>
    %c0_6 = arith.constant 0 : index
    %c0_7 = arith.constant 0 : index
    %8 = vector.load %arg14[%c0_6, %c0_7] : memref<128x128xf32, #tpu.memory_space<vmem>>, vector<128x128xf32>
    tpu.vector_store %arg14[%c0_6, %c0_7], %7 {strides = array<i32>} : memref<128x128xf32, #tpu.memory_space<vmem>>, vector<128x128xf32>,
    %c1_i32 = arith.constant 1 : i32
    %9 = arith.cmpi eq, %arg1, %c1_i32 : i32
    %10 = arith.extui %9 : i1 to i32
    %c0_i32_8 = arith.constant 0 : i32
    %11 = arith.cmpi ne, %10, %c0_i32_8 : i32
    scf.if %11 {
      %c0_9 = arith.constant 0 : index
      %c0_10 = arith.constant 0 : index
      %12 = vector.load %arg14[%c0_9, %c0_10] : memref<128x128xf32, #tpu.memory_space<vmem>>, vector<128x128xf32>
      %13 = arith.truncf %12 : vector<128x128xf32> to vector<128x128xbf16>
      %c0_11 = arith.constant 0 : index
      %c0_12 = arith.constant 0 : index
      %14 = vector.load %arg6[%c0_11, %c0_12] : memref<128x128xbf16, #tpu.memory_space<vmem>>, vector<128x128xbf16>
      %cst_13 = arith.constant dense<0.000000e+00> : vector<128x128xf32>
      %15 = tpu.matmul %13, %14, %cst_13 {dimension_numbers = #tpu.dot_dimension_numbers<[1], [0], [0], [1], [0, 0, 1, 1], [], []>} : vector<128x128xbf16>, vector<128x128xbf16>, vector<128x128xf32> -> vector<128x128xf32>
      %c0_14 = arith.constant 0 : index
      %c0_15 = arith.constant 0 : index
      %16 = vector.load %arg4[%c0_14, %c0_15] : memref<128x128xbf16, #tpu.memory_space<vmem>>, vector<128x128xbf16>
      %c0_16 = arith.constant 0 : index
      %c0_17 = arith.constant 0 : index
      %17 = vector.load %arg5[%c0_16, %c0_17] : memref<128x128xbf16, #tpu.memory_space<vmem>>, vector<128x128xbf16>
      %cst_18 = arith.constant dense<0.000000e+00> : vector<128x128xf32>
      %18 = tpu.matmul %16, %17, %cst_18 {dimension_numbers = #tpu.dot_dimension_numbers<[1], [0], [0], [1], [0, 0, 1, 1], [], []>} : vector<128x128xbf16>, vector<128x128xbf16>, vector<128x128xf32> -> vector<128x128xf32>
      %19 = arith.addf %15, %18 : vector<128x128xf32>
      %c0_19 = arith.constant 0 : index
      %c0_20 = arith.constant 0 : index
      %20 = vector.load %arg7[%c0_19, %c0_20] : memref<1x128xf32, #tpu.memory_space<vmem>>, vector<1x128xf32>
      %21 = vector.broadcast %20 : vector<1x128xf32> to vector<128x128xf32>
      %22 = arith.addf %19, %21 : vector<128x128xf32>
      %23 = arith.truncf %22 : vector<128x128xf32> to vector<128x128xbf16>
      %c0_21 = arith.constant 0 : index
      %c0_22 = arith.constant 0 : index
      %24 = vector.load %arg11[%c0_21, %c0_22] : memref<128x128xbf16, #tpu.memory_space<vmem>>, vector<128x128xbf16>
      tpu.vector_store %arg11[%c0_21, %c0_22], %23 {strides = array<i32>} : memref<128x128xbf16, #tpu.memory_space<vmem>>, vector<128x128xbf16>,
      %25 = arith.truncf %22 : vector<128x128xf32> to vector<128x128xbf16>
      %c0_23 = arith.constant 0 : index
      %c0_24 = arith.constant 0 : index
      %26 = vector.load %arg8[%c0_23, %c0_24] : memref<128x128xbf16, #tpu.memory_space<vmem>>, vector<128x128xbf16>
      %cst_25 = arith.constant dense<0.000000e+00> : vector<128x128xf32>
      %27 = tpu.matmul %25, %26, %cst_25 {dimension_numbers = #tpu.dot_dimension_numbers<[1], [0], [0], [1], [0, 0, 1, 1], [], []>} : vector<128x128xbf16>, vector<128x128xbf16>, vector<128x128xf32> -> vector<128x128xf32>
      %c0_26 = arith.constant 0 : index
      %c0_27 = arith.constant 0 : index
      %28 = vector.load %arg10[%c0_26, %c0_27] : memref<1x128xf32, #tpu.memory_space<vmem>>, vector<1x128xf32>
      %29 = vector.broadcast %28 : vector<1x128xf32> to vector<128x128xf32>
      %30 = arith.addf %27, %29 : vector<128x128xf32>
      %c0_28 = arith.constant 0 : index
      %c0_29 = arith.constant 0 : index
      %31 = vector.load %arg12[%c0_28, %c0_29] : memref<128x128xf32, #tpu.memory_space<vmem>>, vector<128x128xf32>
      tpu.vector_store %arg12[%c0_28, %c0_29], %30 {strides = array<i32>} : memref<128x128xf32, #tpu.memory_space<vmem>>, vector<128x128xf32>,
      %c0_30 = arith.constant 0 : index
      %c0_31 = arith.constant 0 : index
      %32 = vector.load %arg9[%c0_30, %c0_31] : memref<128x128xbf16, #tpu.memory_space<vmem>>, vector<128x128xbf16>
      %cst_32 = arith.constant dense<0.000000e+00> : vector<128x128xf32>
      %33 = tpu.matmul %25, %32, %cst_32 {dimension_numbers = #tpu.dot_dimension_numbers<[1], [0], [0], [1], [0, 0, 1, 1], [], []>} : vector<128x128xbf16>, vector<128x128xbf16>, vector<128x128xf32> -> vector<128x128xf32>
      %c0_33 = arith.constant 0 : index
      %c0_34 = arith.constant 0 : index
      %34 = vector.load %arg13[%c0_33, %c0_34] : memref<128x128xf32, #tpu.memory_space<vmem>>, vector<128x128xf32>
      tpu.vector_store %arg13[%c0_33, %c0_34], %33 {strides = array<i32>} : memref<128x128xf32, #tpu.memory_space<vmem>>, vector<128x128xf32>,
    } else {
    }
    return
  }
  func.func @transform_0(%arg0: i32, %arg1: i32) -> (i32, i32) {
    %c0_i32 = arith.constant 0 : i32
    return %arg0, %arg1 : i32, i32
  }
  func.func @transform_1(%arg0: i32, %arg1: i32) -> (i32, i32) {
    %c0_i32 = arith.constant 0 : i32
    %c0_i32_0 = arith.constant 0 : i32
    return %arg1, %c0_i32 : i32, i32
  }
  func.func @transform_2(%arg0: i32, %arg1: i32) -> (i32, i32) {
    %c0_i32 = arith.constant 0 : i32
    %c0_i32_0 = arith.constant 0 : i32
    return %arg0, %c0_i32 : i32, i32
  }
  func.func @transform_3(%arg0: i32, %arg1: i32) -> (i32, i32) {
    %c0_i32 = arith.constant 0 : i32
    %c0_i32_0 = arith.constant 0 : i32
    %c0_i32_1 = arith.constant 0 : i32
    return %c0_i32, %c0_i32_0 : i32, i32
  }
  func.func @transform_4(%arg0: i32, %arg1: i32) -> (i32, i32) {
    %c0_i32 = arith.constant 0 : i32
    %c0_i32_0 = arith.constant 0 : i32
    %c0_i32_1 = arith.constant 0 : i32
    return %c0_i32, %c0_i32_0 : i32, i32
  }
  func.func @transform_5(%arg0: i32, %arg1: i32) -> (i32, i32) {
    %c0_i32 = arith.constant 0 : i32
    %c0_i32_0 = arith.constant 0 : i32
    %c0_i32_1 = arith.constant 0 : i32
    return %c0_i32, %c0_i32_0 : i32, i32
  }
  func.func @transform_6(%arg0: i32, %arg1: i32) -> (i32, i32) {
    %c0_i32 = arith.constant 0 : i32
    %c0_i32_0 = arith.constant 0 : i32
    %c0_i32_1 = arith.constant 0 : i32
    return %c0_i32, %c0_i32_0 : i32, i32
  }
  func.func @transform_7(%arg0: i32, %arg1: i32) -> (i32, i32) {
    %c0_i32 = arith.constant 0 : i32
    %c0_i32_0 = arith.constant 0 : i32
    %c0_i32_1 = arith.constant 0 : i32
    return %c0_i32, %c0_i32_0 : i32, i32
  }
  func.func @transform_8(%arg0: i32, %arg1: i32) -> (i32, i32) {
    %c0_i32 = arith.constant 0 : i32
    %c0_i32_0 = arith.constant 0 : i32
    %c0_i32_1 = arith.constant 0 : i32
    return %c0_i32, %c0_i32_0 : i32, i32
  }
  func.func @transform_9(%arg0: i32, %arg1: i32) -> (i32, i32) {
    %c0_i32 = arith.constant 0 : i32
    %c0_i32_0 = arith.constant 0 : i32
    return %arg0, %c0_i32 : i32, i32
  }
  func.func @transform_10(%arg0: i32, %arg1: i32) -> (i32, i32) {
    %c0_i32 = arith.constant 0 : i32
    %c0_i32_0 = arith.constant 0 : i32
    return %arg0, %c0_i32 : i32, i32
  }
  func.func @transform_11(%arg0: i32, %arg1: i32) -> (i32, i32) {
    %c0_i32 = arith.constant 0 : i32
    %c0_i32_0 = arith.constant 0 : i32
    return %arg0, %c0_i32 : i32, i32
  }
}

</mosaic_0001>

<llo_original>
// kernel: model_forward.2
$region0: #{model_forward.2}
  #allocation0 [shape = 'u32[]', space=smem, size = 0x4, offset = 0x4, fixed_abs, tag = 'smem constant byte address 0x4 - core index']
  #allocation1 [shape = 'u32[72,128]{1,0:T(1,128)}', space=vmem, size = 0x9000, scoped, tag = 'internal scratch']
  #allocation2 [shape = 'f32[128,128]{1,0:T(8,128)}', space=vmem, size = 0x10000, scoped, tag = 'scratch operand']
  %s0 = inlined_call_operand.vmem [shape: bf16[256,256], index: 0, kind: input, shape index: {}]
  %s1 = inlined_call_operand.vmem [shape: bf16[256,128], index: 1, kind: input, shape index: {}, may-alias: {1,2}]
  %s2 = inlined_call_operand.vmem [shape: bf16[256,128], index: 2, kind: input, shape index: {}, may-alias: {1,2}]
  %s3 = inlined_call_operand.vmem [shape: bf16[128,128], index: 3, kind: input, shape index: {}]
  %s4 = inlined_call_operand.vmem [shape: bf16[128,128], index: 4, kind: input, shape index: {}]
  %s5 = inlined_call_operand.vmem [shape: f32[1,128], index: 5, kind: input, shape index: {}]
  %s6 = inlined_call_operand.vmem [shape: bf16[256,128], index: 6, kind: output, shape index: {}]
  %s7 = sld [smem:[#allocation0]]
  $region106: #{model_forward.2} parent=0
    _
  %s9 = ssub.s32 1, %s7
  %s10 = scalar_select 0, %s9, %s7
  $region1: #{model_forward.2} parent=0
    #allocation3 [shape = 'u8[65536]{0}', space=vmem, size = 0x10000, scoped, tag = 'input window, operand 0']
    loop: start=0, step=1, limit=6
    $region2: #{model_forward.2} parent=1 // loop_pre_header
      _
    $region3: #{model_forward.2} parent=1 // loop_header
      %s12 = sphi 0, %s16
      %p13 = scmp.ge.s32.totalorder %s12, 6
      %s19 = sphi 0, %s31
      %s20 = sphi 0, %s27
      %s21 = sphi 0, %s19
      %s22 = sphi 0, %s20
      %s23 = sphi 0, %s21
      %s24 = sphi 0, %s22
      %s36 = sphi 0, %s38
      %s39 = sphi 0, %s36
      %s40 = sphi 0, %s39
      %s56 = sphi 0, %s40
      %s62 = sphi 0, %s64
      %s65 = sphi 0, %s62
      %s66 = sphi 0, %s65
      %s82 = sphi 0, %s66
      %s88 = sphi 0, %s90
      %s91 = sphi 0, %s88
      %s92 = sphi 0, %s91
      %s108 = sphi 0, %s92
      %s112 = sphi 0, %s112
      %s114 = sphi 0, %s112
      %s115 = sphi 0, %s114
      %s129 = sphi 0, %s115
      %s133 = sphi 0, %s133
      %s135 = sphi 0, %s133
      %s136 = sphi 0, %s135
      %s150 = sphi 0, %s136
      %s154 = sphi 0, %s154
      %s156 = sphi 0, %s154
      %s157 = sphi 0, %s156
      %s171 = sphi 0, %s157
      %s177 = sphi 0, %s179
      %s180 = sphi 0, %s177
      %s181 = sphi 0, %s180
      %s197 = sphi 0, %s181
    $region4: #{model_forward.2} parent=1 // loop_header_branch
      %15 = sbr.rel (%p13) target = $region8
    $region5: #{model_forward.2} parent=1 // loop_body
      %s17 = ssub.s32 %s12, 1
      %s18 = ssub.s32 %s12, 2
      %s25 = sadd.s32 1, %s20
      %p26 = scmp.ge.s32.totalorder %s25, 2
      %s27 = scalar_select %p26, 0, %s25
      %s28 = sadd.s32 1, %s19
      %s29 = scalar_select %p26, %s28, %s19
      %p30 = scmp.ge.s32.totalorder %s29, 2
      %s31 = scalar_select %p30, 0, %s29
      %s32 = ssub.s32 %s19, %s31
      %s33 = ssub.s32 %s20, %s27
      %s34 = sor.u32 %s32, %s33
      %p35 = scmp.eq.s32.totalorder %s34, 0
      %s37 = sadd.s32 %s36, 1
      %s38 = scalar_select %p35, %s36, %s37
      %p41 = pneg %p35
      %p42 = scmp.eq.s32.totalorder %s12, 3
      %p43 = por %p41, %p42
      %p44 = scmp.ne.s32.totalorder %s36, %s39
      %p45 = scmp.eq.s32.totalorder %s12, 0
      %p46 = por %p44, %p45
      %p47 = scmp.ne.s32.totalorder %s36, %s39
      %p48 = scmp.eq.s32.totalorder %s17, 3
      %p49 = por %p47, %p48
      %p50 = scmp.ne.s32.totalorder %s39, %s40
      %p51 = scmp.eq.s32.totalorder %s17, 0
      %p52 = por %p50, %p51
      %p53 = scmp.ne.s32.totalorder %s39, %s40
      %p54 = scmp.eq.s32.totalorder %s18, 3
      %p55 = por %p53, %p54
      %p57 = scmp.ne.s32.totalorder %s40, %s56
      %p58 = scmp.eq.s32.totalorder %s18, 0
      %p59 = por %p57, %p58
      %s60 = ssub.s32 %s20, %s27
      %p61 = scmp.eq.s32.totalorder %s60, 0
      %s63 = sadd.s32 %s62, 1
      %s64 = scalar_select %p61, %s62, %s63
      %p67 = pneg %p61
      %p68 = scmp.eq.s32.totalorder %s12, 3
      %p69 = por %p67, %p68
      %p70 = scmp.ne.s32.totalorder %s62, %s65
      %p71 = scmp.eq.s32.totalorder %s12, 0
      %p72 = por %p70, %p71
      %p73 = scmp.ne.s32.totalorder %s62, %s65
      %p74 = scmp.eq.s32.totalorder %s17, 3
      %p75 = por %p73, %p74
      %p76 = scmp.ne.s32.totalorder %s65, %s66
      %p77 = scmp.eq.s32.totalorder %s17, 0
      %p78 = por %p76, %p77
      %p79 = scmp.ne.s32.totalorder %s65, %s66
      %p80 = scmp.eq.s32.totalorder %s18, 3
      %p81 = por %p79, %p80
      %p83 = scmp.ne.s32.totalorder %s66, %s82
      %p84 = scmp.eq.s32.totalorder %s18, 0
      %p85 = por %p83, %p84
      %s86 = ssub.s32 %s19, %s31
      %p87 = scmp.eq.s32.totalorder %s86, 0
      %s89 = sadd.s32 %s88, 1
      %s90 = scalar_select %p87, %s88, %s89
      %p93 = pneg %p87
      %p94 = scmp.eq.s32.totalorder %s12, 3
      %p95 = por %p93, %p94
      %p96 = scmp.ne.s32.totalorder %s88, %s91
      %p97 = scmp.eq.s32.totalorder %s12, 0
      %p98 = por %p96, %p97
      %p99 = scmp.ne.s32.totalorder %s88, %s91
      %p100 = scmp.eq.s32.totalorder %s17, 3
      %p101 = por %p99, %p100
      %p102 = scmp.ne.s32.totalorder %s91, %s92
      %p103 = scmp.eq.s32.totalorder %s17, 0
      %p104 = por %p102, %p103
      %p105 = scmp.ne.s32.totalorder %s91, %s92
      %p106 = scmp.eq.s32.totalorder %s18, 3
      %p107 = por %p105, %p106
      %p109 = scmp.ne.s32.totalorder %s92, %s108
      %p110 = scmp.eq.s32.totalorder %s18, 0
      %p111 = por %p109, %p110
      %s113 = sadd.s32 %s112, 1
      %p116 = scmp.eq.s32.totalorder %s12, 3
      %p117 = scmp.ne.s32.totalorder %s112, %s114
      %p118 = scmp.eq.s32.totalorder %s12, 0
      %p119 = por %p117, %p118
      %p120 = scmp.ne.s32.totalorder %s112, %s114
      %p121 = scmp.eq.s32.totalorder %s17, 3
      %p122 = por %p120, %p121
      %p123 = scmp.ne.s32.totalorder %s114, %s115
      %p124 = scmp.eq.s32.totalorder %s17, 0
      %p125 = por %p123, %p124
      %p126 = scmp.ne.s32.totalorder %s114, %s115
      %p127 = scmp.eq.s32.totalorder %s18, 3
      %p128 = por %p126, %p127
      %p130 = scmp.ne.s32.totalorder %s115, %s129
      %p131 = scmp.eq.s32.totalorder %s18, 0
      %p132 = por %p130, %p131
      %s134 = sadd.s32 %s133, 1
      %p137 = scmp.eq.s32.totalorder %s12, 3
      %p138 = scmp.ne.s32.totalorder %s133, %s135
      %p139 = scmp.eq.s32.totalorder %s12, 0
      %p140 = por %p138, %p139
      %p141 = scmp.ne.s32.totalorder %s133, %s135
      %p142 = scmp.eq.s32.totalorder %s17, 3
      %p143 = por %p141, %p142
      %p144 = scmp.ne.s32.totalorder %s135, %s136
      %p145 = scmp.eq.s32.totalorder %s17, 0
      %p146 = por %p144, %p145
      %p147 = scmp.ne.s32.totalorder %s135, %s136
      %p148 = scmp.eq.s32.totalorder %s18, 3
      %p149 = por %p147, %p148
      %p151 = scmp.ne.s32.totalorder %s136, %s150
      %p152 = scmp.eq.s32.totalorder %s18, 0
      %p153 = por %p151, %p152
      %s155 = sadd.s32 %s154, 1
      %p158 = scmp.eq.s32.totalorder %s12, 3
      %p159 = scmp.ne.s32.totalorder %s154, %s156
      %p160 = scmp.eq.s32.totalorder %s12, 0
      %p161 = por %p159, %p160
      %p162 = scmp.ne.s32.totalorder %s154, %s156
      %p163 = scmp.eq.s32.totalorder %s17, 3
      %p164 = por %p162, %p163
      %p165 = scmp.ne.s32.totalorder %s156, %s157
      %p166 = scmp.eq.s32.totalorder %s17, 0
      %p167 = por %p165, %p166
      %p168 = scmp.ne.s32.totalorder %s156, %s157
      %p169 = scmp.eq.s32.totalorder %s18, 3
      %p170 = por %p168, %p169
      %p172 = scmp.ne.s32.totalorder %s157, %s171
      %p173 = scmp.eq.s32.totalorder %s18, 0
      %p174 = por %p172, %p173
      %s175 = ssub.s32 %s19, %s31
      %p176 = scmp.eq.s32.totalorder %s175, 0
      %s178 = sadd.s32 %s177, 1
      %s179 = scalar_select %p176, %s177, %s178
      %p182 = pneg %p176
      %p183 = scmp.eq.s32.totalorder %s12, 3
      %p184 = por %p182, %p183
      %p185 = scmp.ne.s32.totalorder %s177, %s180
      %p186 = scmp.eq.s32.totalorder %s12, 0
      %p187 = por %p185, %p186
      %p188 = scmp.ne.s32.totalorder %s177, %s180
      %p189 = scmp.eq.s32.totalorder %s17, 3
      %p190 = por %p188, %p189
      %p191 = scmp.ne.s32.totalorder %s180, %s181
      %p192 = scmp.eq.s32.totalorder %s17, 0
      %p193 = por %p191, %p192
      %p194 = scmp.ne.s32.totalorder %s180, %s181
      %p195 = scmp.eq.s32.totalorder %s18, 3
      %p196 = por %p194, %p195
      %p198 = scmp.ne.s32.totalorder %s181, %s197
      %p199 = scmp.eq.s32.totalorder %s18, 0
      %p200 = por %p198, %p199
      %p201 = scmp.le.s32.totalorder 1, %s12
      %p202 = scmp.lt.s32.totalorder %s12, 5
      %p203 = pnand %p201, %p202
      %p204 = pneg %p203
      // Predicated region
      $region9: #{model_forward.2} parent=5 // pred_check
        _
      $region10: #{model_forward.2} parent=5 // pred_check_branch
        %206 = sbr.rel (%p203) target = $region12
      $region11: #{model_forward.2} parent=5 // pred_region
        %s207 = ssub.s32 %s12, 1
        // Predicated region
        $region13: #{model_forward.2} parent=11 // pred_check
          %p208 = pneg %p125
        $region14: #{model_forward.2} parent=11 // pred_check_branch
          %210 = sbr.rel (%p208) target = $region16
        $region15: #{model_forward.2} parent=11 // pred_region
          _
        $region16: #{model_forward.2} parent=11 // pred_fallthru
          _
        // Predicated region
        $region17: #{model_forward.2} parent=11 // pred_check
          %p211 = pneg %p146
        $region18: #{model_forward.2} parent=11 // pred_check_branch
          %213 = sbr.rel (%p211) target = $region20
        $region19: #{model_forward.2} parent=11 // pred_region
          _
        $region20: #{model_forward.2} parent=11 // pred_fallthru
          _
        // Predicated region
        $region21: #{model_forward.2} parent=11 // pred_check
          %p214 = pneg %p167
        $region22: #{model_forward.2} parent=11 // pred_check_branch
          %216 = sbr.rel (%p214) target = $region24
        $region23: #{model_forward.2} parent=11 // pred_region
          _
        $region24: #{model_forward.2} parent=11 // pred_fallthru
          _
      $region12: #{model_forward.2} parent=5 // pred_fallthru
        _
      %p217 = scmp.lt.s32.totalorder %s12, 4
      // Predicated region
      $region25: #{model_forward.2} parent=5 // pred_check
        %p218 = pneg %p217
      $region26: #{model_forward.2} parent=5 // pred_check_branch
        %220 = sbr.rel (%p218) target = $region28
      $region27: #{model_forward.2} parent=5 // pred_region
        // Predicated region
        $region29: #{model_forward.2} parent=27 // pred_check
          %p221 = pneg %p46
        $region30: #{model_forward.2} parent=27 // pred_check_branch
          %223 = sbr.rel (%p221) target = $region32
        $region31: #{model_forward.2} parent=27 // pred_region
          %s224 = sand.u32 %s36, 1
          %s225 = sand.u32 %s36, 1
          %s226 = smul.addr %s225, 64
          %s227 = scalar_lea.vmem [#allocation3], %s226
          %s228 = smul.u32 16, %s19
          %s229 = smul.addr %s228, 2
          %s230 = sadd.s32 %s20, %s229
          %s231 = smul.addr %s230, 4
          %s232 = scalar_lea.vmem %s0, %s231
          // Predicated region
          $region33: #{model_forward.2} parent=31 // pred_check
            _
          $region34: #{model_forward.2} parent=31 // pred_check_branch
            %234 = sbr.rel (0) target = $region36
          $region35: #{model_forward.2} parent=31 // pred_region
            // Predicated region
            $region37: #{model_forward.2} parent=35 // pred_check
              _
            $region38: #{model_forward.2} parent=35 // pred_check_branch
              %236 = sbr.rel target = $region40
            $region39: #{model_forward.2} parent=35 // pred_region
              // Predicated region
              $region52: #{model_forward.2} parent=39 // pred_check
                _
              $region53: #{model_forward.2} parent=39 // pred_check_branch
                %282 = sbr.rel (0) target = $region55
              $region54: #{model_forward.2} parent=39 // pred_region
                loop: start=0, step=1, limit=1
                $region56: #{model_forward.2} parent=54 // loop_pre_header
                  _
                $region57: #{model_forward.2} parent=54 // loop_header
                  %s284 = sphi 0, %s288
                  %p285 = scmp.ge.s32.totalorder %s284, 1
                  %s289 = sphi %s232, %s232
                  %s290 = sphi %s227, %s227
                $region58: #{model_forward.2} parent=54 // loop_header_branch
                  %287 = sbr.rel (%p285) target = $region62
                $region59: #{model_forward.2} parent=54 // loop_body
                  _
                $region60: #{model_forward.2} parent=54 // loop_footer
                  %s288 = sadd.s32 1, %s284
                $region61: #{model_forward.2} parent=54 // loop_footer_branch
                  %283 = sbr.rel target = $region57
                $region62: #{model_forward.2} parent=54 // loop_exit
                  _
                %s292 = ssub.s32 16, 1
                loop: start=0, step=1, limit=1
                $region63: #{model_forward.2} parent=54 // loop_pre_header
                  _
                $region64: #{model_forward.2} parent=54 // loop_header
                  %s294 = sphi 0, %s298
                  %p295 = scmp.ge.s32.totalorder %s294, 1
                  %s299 = sphi %s232, %s232
                  %s300 = sphi %s227, %s227
                $region65: #{model_forward.2} parent=54 // loop_header_branch
                  %297 = sbr.rel (%p295) target = $region69
                $region66: #{model_forward.2} parent=54 // loop_body
                  %v301 = vld [vmem:[%s299] sm:%s292]
                  %302 = vst [vmem:[%s300] sm:%s292] %v301
                  %v303 = vld [vmem:[%s299 + $0x8] sm:%s292]
                  %304 = vst [vmem:[%s300 + $0x4] sm:%s292] %v303
                  %v305 = vld [vmem:[%s299 + $0x10] sm:%s292]
                  %306 = vst [vmem:[%s300 + $0x8] sm:%s292] %v305
                  %v307 = vld [vmem:[%s299 + $0x18] sm:%s292]
                  %308 = vst [vmem:[%s300 + $0xc] sm:%s292] %v307
                  %v309 = vld [vmem:[%s299 + $0x20] sm:%s292]
                  %310 = vst [vmem:[%s300 + $0x10] sm:%s292] %v309
                  %v311 = vld [vmem:[%s299 + $0x28] sm:%s292]
                  %312 = vst [vmem:[%s300 + $0x14] sm:%s292] %v311
                  %v313 = vld [vmem:[%s299 + $0x30] sm:%s292]
                  %314 = vst [vmem:[%s300 + $0x18] sm:%s292] %v313
                  %v315 = vld [vmem:[%s299 + $0x38] sm:%s292]
                  %316 = vst [vmem:[%s300 + $0x1c] sm:%s292] %v315
                  %v317 = vld [vmem:[%s299 + $0x40] sm:%s292]
                  %318 = vst [vmem:[%s300 + $0x20] sm:%s292] %v317
                  %v319 = vld [vmem:[%s299 + $0x48] sm:%s292]
                  %320 = vst [vmem:[%s300 + $0x24] sm:%s292] %v319
                  %v321 = vld [vmem:[%s299 + $0x50] sm:%s292]
                  %322 = vst [vmem:[%s300 + $0x28] sm:%s292] %v321
                  %v323 = vld [vmem:[%s299 + $0x58] sm:%s292]
                  %324 = vst [vmem:[%s300 + $0x2c] sm:%s292] %v323
                  %v325 = vld [vmem:[%s299 + $0x60] sm:%s292]
                  %326 = vst [vmem:[%s300 + $0x30] sm:%s292] %v325
                  %v327 = vld [vmem:[%s299 + $0x68] sm:%s292]
                  %328 = vst [vmem:[%s300 + $0x34] sm:%s292] %v327
                  %v329 = vld [vmem:[%s299 + $0x70] sm:%s292]
                  %330 = vst [vmem:[%s300 + $0x38] sm:%s292] %v329
                  %v331 = vld [vmem:[%s299 + $0x78] sm:%s292]
                  %332 = vst [vmem:[%s300 + $0x3c] sm:%s292] %v331
                $region67: #{model_forward.2} parent=54 // loop_footer
                  %s298 = sadd.s32 1, %s294
                $region68: #{model_forward.2} parent=54 // loop_footer_branch
                  %293 = sbr.rel target = $region64
                $region69: #{model_forward.2} parent=54 // loop_exit
                  _
              $region55: #{model_forward.2} parent=39 // pred_fallthru
                _
            $region40: #{model_forward.2} parent=35 // pred_fallthru
              _
            // Predicated region
            $region41: #{model_forward.2} parent=35 // pred_check
              _
            $region42: #{model_forward.2} parent=35 // pred_check_branch
              %238 = sbr.rel (0) target = $region44
            $region43: #{model_forward.2} parent=35 // pred_region
              %s240 = ssub.s32 16, 1
              loop: start=0, step=1, limit=1
              $region45: #{model_forward.2} parent=43 // loop_pre_header
                _
              $region46: #{model_forward.2} parent=43 // loop_header
                %s242 = sphi 0, %s246
                %p243 = scmp.ge.s32.totalorder %s242, 1
                %s247 = sphi %s232, %s232
                %s248 = sphi %s227, %s227
              $region47: #{model_forward.2} parent=43 // loop_header_branch
                %245 = sbr.rel (%p243) target = $region51
              $region48: #{model_forward.2} parent=43 // loop_body
                %v249 = vld [vmem:[%s247] sm:%s240]
                %250 = vst [vmem:[%s248] sm:%s240] %v249
                %v251 = vld [vmem:[%s247 + $0x8] sm:%s240]
                %252 = vst [vmem:[%s248 + $0x4] sm:%s240] %v251
                %v253 = vld [vmem:[%s247 + $0x10] sm:%s240]
                %254 = vst [vmem:[%s248 + $0x8] sm:%s240] %v253
                %v255 = vld [vmem:[%s247 + $0x18] sm:%s240]
                %256 = vst [vmem:[%s248 + $0xc] sm:%s240] %v255
                %v257 = vld [vmem:[%s247 + $0x20] sm:%s240]
                %258 = vst [vmem:[%s248 + $0x10] sm:%s240] %v257
                %v259 = vld [vmem:[%s247 + $0x28] sm:%s240]
                %260 = vst [vmem:[%s248 + $0x14] sm:%s240] %v259
                %v261 = vld [vmem:[%s247 + $0x30] sm:%s240]
                %262 = vst [vmem:[%s248 + $0x18] sm:%s240] %v261
                %v263 = vld [vmem:[%s247 + $0x38] sm:%s240]
                %264 = vst [vmem:[%s248 + $0x1c] sm:%s240] %v263
                %v265 = vld [vmem:[%s247 + $0x40] sm:%s240]
                %266 = vst [vmem:[%s248 + $0x20] sm:%s240] %v265
                %v267 = vld [vmem:[%s247 + $0x48] sm:%s240]
                %268 = vst [vmem:[%s248 + $0x24] sm:%s240] %v267
                %v269 = vld [vmem:[%s247 + $0x50] sm:%s240]
                %270 = vst [vmem:[%s248 + $0x28] sm:%s240] %v269
                %v271 = vld [vmem:[%s247 + $0x58] sm:%s240]
                %272 = vst [vmem:[%s248 + $0x2c] sm:%s240] %v271
                %v273 = vld [vmem:[%s247 + $0x60] sm:%s240]
                %274 = vst [vmem:[%s248 + $0x30] sm:%s240] %v273
                %v275 = vld [vmem:[%s247 + $0x68] sm:%s240]
                %276 = vst [vmem:[%s248 + $0x34] sm:%s240] %v275
                %v277 = vld [vmem:[%s247 + $0x70] sm:%s240]
                %278 = vst [vmem:[%s248 + $0x38] sm:%s240] %v277
                %v279 = vld [vmem:[%s247 + $0x78] sm:%s240]
                %280 = vst [vmem:[%s248 + $0x3c] sm:%s240] %v279
              $region49: #{model_forward.2} parent=43 // loop_footer
                %s246 = sadd.s32 1, %s242
              $region50: #{model_forward.2} parent=43 // loop_footer_branch
                %241 = sbr.rel target = $region46
              $region51: #{model_forward.2} parent=43 // loop_exit
                _
            $region44: #{model_forward.2} parent=35 // pred_fallthru
              _
          $region36: #{model_forward.2} parent=31 // pred_fallthru
            _
          %333 = vnop
        $region32: #{model_forward.2} parent=27 // pred_fallthru
          _
        // Predicated region
        $region70: #{model_forward.2} parent=27 // pred_check
          %p334 = pneg %p72
        $region71: #{model_forward.2} parent=27 // pred_check_branch
          %336 = sbr.rel (%p334) target = $region73
        $region72: #{model_forward.2} parent=27 // pred_region
          %s337 = smul.u32 16, %s20
          %p338 = scmp.lt.s32.totalorder %s337, 31
          %s339 = scalar_select %p338, %s337, 31
          %s340 = smul.addr %s339, 4
          %s341 = scalar_lea.vmem %s1, %s340
          %s342 = smul.u32 16, %s20
        $region73: #{model_forward.2} parent=27 // pred_fallthru
          _
        // Predicated region
        $region74: #{model_forward.2} parent=27 // pred_check
          %p343 = pneg %p98
        $region75: #{model_forward.2} parent=27 // pred_check_branch
          %345 = sbr.rel (%p343) target = $region77
        $region76: #{model_forward.2} parent=27 // pred_region
          %s346 = smul.u32 16, %s19
          %p347 = scmp.lt.s32.totalorder %s346, 31
          %s348 = scalar_select %p347, %s346, 31
          %s349 = smul.addr %s348, 4
          %s350 = scalar_lea.vmem %s2, %s349
          %s351 = smul.u32 16, %s19
        $region77: #{model_forward.2} parent=27 // pred_fallthru
          _
      $region28: #{model_forward.2} parent=5 // pred_fallthru
        _
      %p352 = scmp.le.s32.totalorder 1, %s12
      %p353 = scmp.lt.s32.totalorder %s12, 5
      %p354 = pnand %p352, %p353
      %p355 = pneg %p354
      // Predicated region
      $region78: #{model_forward.2} parent=5 // pred_check
        _
      $region79: #{model_forward.2} parent=5 // pred_check_branch
        %357 = sbr.rel (%p354) target = $region81
      $region80: #{model_forward.2} parent=5 // pred_region
        %s358 = ssub.s32 %s12, 1
        %s359 = sand.u32 %s39, 1
        %s360 = sand.u32 %s39, 1
        %s361 = smul.addr %s360, 64
        %s362 = scalar_lea.vmem [#allocation3], %s361
        // Predicated region
        $region82: #{model_forward.2} parent=80 // pred_check
          %p363 = pneg %p52
        $region83: #{model_forward.2} parent=80 // pred_check_branch
          %365 = sbr.rel (%p363) target = $region85
        $region84: #{model_forward.2} parent=80 // pred_region
          _
        $region85: #{model_forward.2} parent=80 // pred_fallthru
          _
        %s366 = sand.u32 %s39, 1
        %s367 = sand.u32 %s39, 1
        %s368 = smul.addr %s367, 64
        %s369 = scalar_lea.vmem [#allocation3], %s368
        %p370 = pneg %p52
        %p371 = pneg %p49
        %s372 = smul.u32 16, %s22
        %p373 = scmp.lt.s32.totalorder %s372, 31
        %s374 = scalar_select %p373, %s372, 31
        %s375 = smul.addr %s374, 4
        %s376 = scalar_lea.vmem %s1, %s375
        %p377 = pneg %p78
        %p378 = pneg %p75
        %s379 = smul.u32 16, %s21
        %p380 = scmp.lt.s32.totalorder %s379, 31
        %s381 = scalar_select %p380, %s379, 31
        %s382 = smul.addr %s381, 4
        %s383 = scalar_lea.vmem %s2, %s382
        %p384 = pneg %p104
        %p385 = pneg %p101
        %p386 = pneg %p125
        %p387 = pneg %p122
        %p388 = pneg %p146
        %p389 = pneg %p143
        %p390 = pneg %p167
        %p391 = pneg %p164
        %p392 = pneg %p193
        %p393 = pneg %p190
        %s394 = smul.u32 16, %s21
        %p395 = scmp.lt.s32.totalorder %s394, 31
        %s396 = scalar_select %p395, %s394, 31
        %s397 = smul.addr %s396, 4
        %s398 = scalar_lea.vmem %s6, %s397
        %s399 = smul.u32 16, %s21
        %s400 = smul.u32 16, %s22
        %p401 = scmp.lt.s32.totalorder %s400, 31
        %s402 = scalar_select %p401, %s400, 31
        %s403 = smul.addr %s402, 4
        %s404 = scalar_lea.vmem %s1, %s403
        %s405 = smul.u32 16, %s22
        %s406 = smul.u32 16, %s21
        %p407 = scmp.lt.s32.totalorder %s406, 31
        %s408 = scalar_select %p407, %s406, 31
        %s409 = smul.addr %s408, 4
        %s410 = scalar_lea.vmem %s2, %s409
        %s411 = smul.u32 16, %s21
        %s412 = smul.u32 16, %s21
        %p413 = scmp.lt.s32.totalorder %s412, 31
        %s414 = scalar_select %p413, %s412, 31
        %s415 = smul.addr %s414, 4
        %s416 = scalar_lea.vmem %s6, %s415
        %s417 = smul.u32 16, %s21
        %p418 = scmp.eq.s32.totalorder %s22, 0
        // Predicated region
        $region86: #{model_forward.2} parent=80 // pred_check
          %p419 = pneg %p418
        $region87: #{model_forward.2} parent=80 // pred_check_branch
          %421 = sbr.rel (%p419) target = $region89
        $region88: #{model_forward.2} parent=80 // pred_region
          %422 = vst [vmem:[#allocation2] sm:$0xff] 0.0
          %423 = vst [vmem:[#allocation2 + $0x8] sm:$0xff] 0.0
          %424 = vst [vmem:[#allocation2 + $0x10] sm:$0xff] 0.0
          %425 = vst [vmem:[#allocation2 + $0x18] sm:$0xff] 0.0
          %426 = vst [vmem:[#allocation2 + $0x20] sm:$0xff] 0.0
          %427 = vst [vmem:[#allocation2 + $0x28] sm:$0xff] 0.0
          %428 = vst [vmem:[#allocation2 + $0x30] sm:$0xff] 0.0
          %429 = vst [vmem:[#allocation2 + $0x38] sm:$0xff] 0.0
          %430 = vst [vmem:[#allocation2 + $0x40] sm:$0xff] 0.0
          %431 = vst [vmem:[#allocation2 + $0x48] sm:$0xff] 0.0
          %432 = vst [vmem:[#allocation2 + $0x50] sm:$0xff] 0.0
          %433 = vst [vmem:[#allocation2 + $0x58] sm:$0xff] 0.0
          %434 = vst [vmem:[#allocation2 + $0x60] sm:$0xff] 0.0
          %435 = vst [vmem:[#allocation2 + $0x68] sm:$0xff] 0.0
          %436 = vst [vmem:[#allocation2 + $0x70] sm:$0xff] 0.0
          %437 = vst [vmem:[#allocation2 + $0x78] sm:$0xff] 0.0
        $region89: #{model_forward.2} parent=80 // pred_fallthru
          _
        %v438 = vld [vmem:[#allocation2] sm:$0xff]
        %v439 = vld [vmem:[#allocation2 + $0x8] sm:$0xff]
        %v440 = vld [vmem:[#allocation2 + $0x10] sm:$0xff]
        %v441 = vld [vmem:[#allocation2 + $0x18] sm:$0xff]
        %v442 = vld [vmem:[#allocation2 + $0x20] sm:$0xff]
        %v443 = vld [vmem:[#allocation2 + $0x28] sm:$0xff]
        %v444 = vld [vmem:[#allocation2 + $0x30] sm:$0xff]
        %v445 = vld [vmem:[#allocation2 + $0x38] sm:$0xff]
        %v446 = vld [vmem:[#allocation2 + $0x40] sm:$0xff]
        %v447 = vld [vmem:[#allocation2 + $0x48] sm:$0xff]
        %v448 = vld [vmem:[#allocation2 + $0x50] sm:$0xff]
        %v449 = vld [vmem:[#allocation2 + $0x58] sm:$0xff]
        %v450 = vld [vmem:[#allocation2 + $0x60] sm:$0xff]
        %v451 = vld [vmem:[#allocation2 + $0x68] sm:$0xff]
        %v452 = vld [vmem:[#allocation2 + $0x70] sm:$0xff]
        %v453 = vld [vmem:[#allocation2 + $0x78] sm:$0xff]
        %v454 = vld [vmem:[%s362] sm:$0xf]
        %v455 = vld [vmem:[%s362 + $0x4] sm:$0xf]
        %v456 = vld [vmem:[%s362 + $0x8] sm:$0xf]
        %v457 = vld [vmem:[%s362 + $0xc] sm:$0xf]
        %v458 = vld [vmem:[%s362 + $0x10] sm:$0xf]
        %v459 = vld [vmem:[%s362 + $0x14] sm:$0xf]
        %v460 = vld [vmem:[%s362 + $0x18] sm:$0xf]
        %v461 = vld [vmem:[%s362 + $0x1c] sm:$0xf]
        %v462 = vld [vmem:[%s362 + $0x20] sm:$0xf]
        %v463 = vld [vmem:[%s362 + $0x24] sm:$0xf]
        %v464 = vld [vmem:[%s362 + $0x28] sm:$0xf]
        %v465 = vld [vmem:[%s362 + $0x2c] sm:$0xf]
        %v466 = vld [vmem:[%s362 + $0x30] sm:$0xf]
        %v467 = vld [vmem:[%s362 + $0x34] sm:$0xf]
        %v468 = vld [vmem:[%s362 + $0x38] sm:$0xf]
        %v469 = vld [vmem:[%s362 + $0x3c] sm:$0xf]
        %v470 = vld [vmem:[%s404] sm:$0xf]
        %v471 = vld [vmem:[%s404 + $0x4] sm:$0xf]
        %v472 = vld [vmem:[%s404 + $0x8] sm:$0xf]
        %v473 = vld [vmem:[%s404 + $0xc] sm:$0xf]
        %v474 = vld [vmem:[%s404 + $0x10] sm:$0xf]
        %v475 = vld [vmem:[%s404 + $0x14] sm:$0xf]
        %v476 = vld [vmem:[%s404 + $0x18] sm:$0xf]
        %v477 = vld [vmem:[%s404 + $0x1c] sm:$0xf]
        %v478 = vld [vmem:[%s404 + $0x20] sm:$0xf]
        %v479 = vld [vmem:[%s404 + $0x24] sm:$0xf]
        %v480 = vld [vmem:[%s404 + $0x28] sm:$0xf]
        %v481 = vld [vmem:[%s404 + $0x2c] sm:$0xf]
        %v482 = vld [vmem:[%s404 + $0x30] sm:$0xf]
        %v483 = vld [vmem:[%s404 + $0x34] sm:$0xf]
        %v484 = vld [vmem:[%s404 + $0x38] sm:$0xf]
        %v485 = vld [vmem:[%s404 + $0x3c] sm:$0xf]
        %v502 = vunpack.c.l.b16 %v454
        %v503 = vunpack.c.l.b16 %v455
        %v504 = vunpack.c.l.b16 %v456
        %v505 = vunpack.c.l.b16 %v457
        %v506 = vunpack.c.l.b16 %v458
        %v507 = vunpack.c.l.b16 %v459
        %v508 = vunpack.c.l.b16 %v460
        %v509 = vunpack.c.l.b16 %v461
        %v510 = vunpack.c.l.b16 %v462
        %v511 = vunpack.c.l.b16 %v463
        %v512 = vunpack.c.l.b16 %v464
        %v513 = vunpack.c.l.b16 %v465
        %v514 = vunpack.c.l.b16 %v466
        %v515 = vunpack.c.l.b16 %v467
        %v516 = vunpack.c.l.b16 %v468
        %v517 = vunpack.c.l.b16 %v469
        %v518 = vpack.c.b16 %v503, %v502
        %v519 = vpack.c.b16 %v505, %v504
        %v520 = vpack.c.b16 %v507, %v506
        %v521 = vpack.c.b16 %v509, %v508
        %v522 = vpack.c.b16 %v511, %v510
        %v523 = vpack.c.b16 %v513, %v512
        %v524 = vpack.c.b16 %v515, %v514
        %v525 = vpack.c.b16 %v517, %v516
        %v550 = vunpack.c.l.b16 %v470
        %v551 = vunpack.c.l.b16 %v471
        %v552 = vunpack.c.l.b16 %v472
        %v553 = vunpack.c.l.b16 %v473
        %v554 = vunpack.c.l.b16 %v474
        %v555 = vunpack.c.l.b16 %v475
        %v556 = vunpack.c.l.b16 %v476
        %v557 = vunpack.c.l.b16 %v477
        %v558 = vunpack.c.l.b16 %v478
        %v559 = vunpack.c.l.b16 %v479
        %v560 = vunpack.c.l.b16 %v480
        %v561 = vunpack.c.l.b16 %v481
        %v562 = vunpack.c.l.b16 %v482
        %v563 = vunpack.c.l.b16 %v483
        %v564 = vunpack.c.l.b16 %v484
        %v565 = vunpack.c.l.b16 %v485
        %v566 = vpack.c.b16 %v551, %v550
        %v567 = vpack.c.b16 %v553, %v552
        %v568 = vpack.c.b16 %v555, %v554
        %v569 = vpack.c.b16 %v557, %v556
        %v570 = vpack.c.b16 %v559, %v558
        %v571 = vpack.c.b16 %v561, %v560
        %v572 = vpack.c.b16 %v563, %v562
        %v573 = vpack.c.b16 %v565, %v564
        %582 = vmatpush.bf16.msra.mxu0 %v573
        %583 = vmatpush.bf16.msra.mxu0 %v572
        %584 = vmatpush.bf16.msra.mxu0 %v571
        %585 = vmatpush.bf16.msra.mxu0 %v570
        %586 = vmatpush.bf16.msra.mxu0 %v569
        %587 = vmatpush.bf16.msra.mxu0 %v568
        %588 = vmatpush.bf16.msra.mxu0 %v567
        %589 = vmatpush.bf16.msra.mxu0 %v566
        %590 = vmatmul.bf16.gmra.mxu0 %v518
        %v591 = vpop.f32.mrf.mxu0
        %v592 = vadd.f32 0.0, %v591
        %v593 = vpop.f32.mrf.mxu0
        %v594 = vadd.f32 0.0, %v593
        %595 = vmatmul.bf16.gmra.mxu0 %v519
        %v596 = vpop.f32.mrf.mxu0
        %v597 = vadd.f32 0.0, %v596
        %v598 = vpop.f32.mrf.mxu0
        %v599 = vadd.f32 0.0, %v598
        %600 = vmatmul.bf16.gmra.mxu0 %v520
        %v601 = vpop.f32.mrf.mxu0
        %v602 = vadd.f32 0.0, %v601
        %v603 = vpop.f32.mrf.mxu0
        %v604 = vadd.f32 0.0, %v603
        %605 = vmatmul.bf16.gmra.mxu0 %v521
        %v606 = vpop.f32.mrf.mxu0
        %v607 = vadd.f32 0.0, %v606
        %v608 = vpop.f32.mrf.mxu0
        %v609 = vadd.f32 0.0, %v608
        %610 = vmatmul.bf16.gmra.mxu0 %v522
        %v611 = vpop.f32.mrf.mxu0
        %v612 = vadd.f32 0.0, %v611
        %v613 = vpop.f32.mrf.mxu0
        %v614 = vadd.f32 0.0, %v613
        %615 = vmatmul.bf16.gmra.mxu0 %v523
        %v616 = vpop.f32.mrf.mxu0
        %v617 = vadd.f32 0.0, %v616
        %v618 = vpop.f32.mrf.mxu0
        %v619 = vadd.f32 0.0, %v618
        %620 = vmatmul.bf16.gmra.mxu0 %v524
        %v621 = vpop.f32.mrf.mxu0
        %v622 = vadd.f32 0.0, %v621
        %v623 = vpop.f32.mrf.mxu0
        %v624 = vadd.f32 0.0, %v623
        %625 = vmatmul.bf16.gmra.mxu0 %v525
        %v626 = vpop.f32.mrf.mxu0
        %v627 = vadd.f32 0.0, %v626
        %v628 = vpop.f32.mrf.mxu0
        %v629 = vadd.f32 0.0, %v628
        %630 = vdwg.mxu0
        %v631 = vadd.f32 %v438, %v592
        %v632 = vadd.f32 %v439, %v594
        %v633 = vadd.f32 %v440, %v597
        %v634 = vadd.f32 %v441, %v599
        %v635 = vadd.f32 %v442, %v602
        %v636 = vadd.f32 %v443, %v604
        %v637 = vadd.f32 %v444, %v607
        %v638 = vadd.f32 %v445, %v609
        %v639 = vadd.f32 %v446, %v612
        %v640 = vadd.f32 %v447, %v614
        %v641 = vadd.f32 %v448, %v617
        %v642 = vadd.f32 %v449, %v619
        %v643 = vadd.f32 %v450, %v622
        %v644 = vadd.f32 %v451, %v624
        %v645 = vadd.f32 %v452, %v627
        %v646 = vadd.f32 %v453, %v629
        %647 = vst [vmem:[#allocation2] sm:$0xff] %v631
        %648 = vst [vmem:[#allocation2 + $0x8] sm:$0xff] %v632
        %649 = vst [vmem:[#allocation2 + $0x10] sm:$0xff] %v633
        %650 = vst [vmem:[#allocation2 + $0x18] sm:$0xff] %v634
        %651 = vst [vmem:[#allocation2 + $0x20] sm:$0xff] %v635
        %652 = vst [vmem:[#allocation2 + $0x28] sm:$0xff] %v636
        %653 = vst [vmem:[#allocation2 + $0x30] sm:$0xff] %v637
        %654 = vst [vmem:[#allocation2 + $0x38] sm:$0xff] %v638
        %655 = vst [vmem:[#allocation2 + $0x40] sm:$0xff] %v639
        %656 = vst [vmem:[#allocation2 + $0x48] sm:$0xff] %v640
        %657 = vst [vmem:[#allocation2 + $0x50] sm:$0xff] %v641
        %658 = vst [vmem:[#allocation2 + $0x58] sm:$0xff] %v642
        %659 = vst [vmem:[#allocation2 + $0x60] sm:$0xff] %v643
        %660 = vst [vmem:[#allocation2 + $0x68] sm:$0xff] %v644
        %661 = vst [vmem:[#allocation2 + $0x70] sm:$0xff] %v645
        %662 = vst [vmem:[#allocation2 + $0x78] sm:$0xff] %v646
        %p663 = scmp.eq.s32.totalorder %s22, 1
        // Predicated region
        $region90: #{model_forward.2} parent=80 // pred_check
          %p664 = pneg %p663
        $region91: #{model_forward.2} parent=80 // pred_check_branch
          %666 = sbr.rel (%p664) target = $region93
        $region92: #{model_forward.2} parent=80 // pred_region
          %v667 = vld [vmem:[#allocation2] sm:$0xff]
          %v668 = vld [vmem:[#allocation2 + $0x8] sm:$0xff]
          %v669 = vld [vmem:[#allocation2 + $0x10] sm:$0xff]
          %v670 = vld [vmem:[#allocation2 + $0x18] sm:$0xff]
          %v671 = vld [vmem:[#allocation2 + $0x20] sm:$0xff]
          %v672 = vld [vmem:[#allocation2 + $0x28] sm:$0xff]
          %v673 = vld [vmem:[#allocation2 + $0x30] sm:$0xff]
          %v674 = vld [vmem:[#allocation2 + $0x38] sm:$0xff]
          %v675 = vld [vmem:[#allocation2 + $0x40] sm:$0xff]
          %v676 = vld [vmem:[#allocation2 + $0x48] sm:$0xff]
          %v677 = vld [vmem:[#allocation2 + $0x50] sm:$0xff]
          %v678 = vld [vmem:[#allocation2 + $0x58] sm:$0xff]
          %v679 = vld [vmem:[#allocation2 + $0x60] sm:$0xff]
          %v680 = vld [vmem:[#allocation2 + $0x68] sm:$0xff]
          %v681 = vld [vmem:[#allocation2 + $0x70] sm:$0xff]
          %v682 = vld [vmem:[#allocation2 + $0x78] sm:$0xff]
          %v683 = vpack.c.bf16 %v668, %v667
          %v684 = vpack.c.bf16 %v670, %v669
          %v685 = vpack.c.bf16 %v672, %v671
          %v686 = vpack.c.bf16 %v674, %v673
          %v687 = vpack.c.bf16 %v676, %v675
          %v688 = vpack.c.bf16 %v678, %v677
          %v689 = vpack.c.bf16 %v680, %v679
          %v690 = vpack.c.bf16 %v682, %v681
          %v691 = vld [vmem:[%s4] sm:$0xf]
          %v692 = vld [vmem:[%s4 + $0x4] sm:$0xf]
          %v693 = vld [vmem:[%s4 + $0x8] sm:$0xf]
          %v694 = vld [vmem:[%s4 + $0xc] sm:$0xf]
          %v695 = vld [vmem:[%s4 + $0x10] sm:$0xf]
          %v696 = vld [vmem:[%s4 + $0x14] sm:$0xf]
          %v697 = vld [vmem:[%s4 + $0x18] sm:$0xf]
          %v698 = vld [vmem:[%s4 + $0x1c] sm:$0xf]
          %v699 = vld [vmem:[%s4 + $0x20] sm:$0xf]
          %v700 = vld [vmem:[%s4 + $0x24] sm:$0xf]
          %v701 = vld [vmem:[%s4 + $0x28] sm:$0xf]
          %v702 = vld [vmem:[%s4 + $0x2c] sm:$0xf]
          %v703 = vld [vmem:[%s4 + $0x30] sm:$0xf]
          %v704 = vld [vmem:[%s4 + $0x34] sm:$0xf]
          %v705 = vld [vmem:[%s4 + $0x38] sm:$0xf]
          %v706 = vld [vmem:[%s4 + $0x3c] sm:$0xf]
          %v707 = vld [vmem:[%s410] sm:$0xf]
          %v708 = vld [vmem:[%s410 + $0x4] sm:$0xf]
          %v709 = vld [vmem:[%s410 + $0x8] sm:$0xf]
          %v710 = vld [vmem:[%s410 + $0xc] sm:$0xf]
          %v711 = vld [vmem:[%s410 + $0x10] sm:$0xf]
          %v712 = vld [vmem:[%s410 + $0x14] sm:$0xf]
          %v713 = vld [vmem:[%s410 + $0x18] sm:$0xf]
          %v714 = vld [vmem:[%s410 + $0x1c] sm:$0xf]
          %v715 = vld [vmem:[%s410 + $0x20] sm:$0xf]
          %v716 = vld [vmem:[%s410 + $0x24] sm:$0xf]
          %v717 = vld [vmem:[%s410 + $0x28] sm:$0xf]
          %v718 = vld [vmem:[%s410 + $0x2c] sm:$0xf]
          %v719 = vld [vmem:[%s410 + $0x30] sm:$0xf]
          %v720 = vld [vmem:[%s410 + $0x34] sm:$0xf]
          %v721 = vld [vmem:[%s410 + $0x38] sm:$0xf]
          %v722 = vld [vmem:[%s410 + $0x3c] sm:$0xf]
          %v723 = vld [vmem:[%s3] sm:$0xf]
          %v724 = vld [vmem:[%s3 + $0x4] sm:$0xf]
          %v725 = vld [vmem:[%s3 + $0x8] sm:$0xf]
          %v726 = vld [vmem:[%s3 + $0xc] sm:$0xf]
          %v727 = vld [vmem:[%s3 + $0x10] sm:$0xf]
          %v728 = vld [vmem:[%s3 + $0x14] sm:$0xf]
          %v729 = vld [vmem:[%s3 + $0x18] sm:$0xf]
          %v730 = vld [vmem:[%s3 + $0x1c] sm:$0xf]
          %v731 = vld [vmem:[%s3 + $0x20] sm:$0xf]
          %v732 = vld [vmem:[%s3 + $0x24] sm:$0xf]
          %v733 = vld [vmem:[%s3 + $0x28] sm:$0xf]
          %v734 = vld [vmem:[%s3 + $0x2c] sm:$0xf]
          %v735 = vld [vmem:[%s3 + $0x30] sm:$0xf]
          %v736 = vld [vmem:[%s3 + $0x34] sm:$0xf]
          %v737 = vld [vmem:[%s3 + $0x38] sm:$0xf]
          %v738 = vld [vmem:[%s3 + $0x3c] sm:$0xf]
          %v755 = vunpack.c.l.b16 %v707
          %v756 = vunpack.c.l.b16 %v708
          %v757 = vunpack.c.l.b16 %v709
          %v758 = vunpack.c.l.b16 %v710
          %v759 = vunpack.c.l.b16 %v711
          %v760 = vunpack.c.l.b16 %v712
          %v761 = vunpack.c.l.b16 %v713
          %v762 = vunpack.c.l.b16 %v714
          %v763 = vunpack.c.l.b16 %v715
          %v764 = vunpack.c.l.b16 %v716
          %v765 = vunpack.c.l.b16 %v717
          %v766 = vunpack.c.l.b16 %v718
          %v767 = vunpack.c.l.b16 %v719
          %v768 = vunpack.c.l.b16 %v720
          %v769 = vunpack.c.l.b16 %v721
          %v770 = vunpack.c.l.b16 %v722
          %v771 = vpack.c.b16 %v756, %v755
          %v772 = vpack.c.b16 %v758, %v757
          %v773 = vpack.c.b16 %v760, %v759
          %v774 = vpack.c.b16 %v762, %v761
          %v775 = vpack.c.b16 %v764, %v763
          %v776 = vpack.c.b16 %v766, %v765
          %v777 = vpack.c.b16 %v768, %v767
          %v778 = vpack.c.b16 %v770, %v769
          %v803 = vunpack.c.l.b16 %v723
          %v804 = vunpack.c.l.b16 %v724
          %v805 = vunpack.c.l.b16 %v725
          %v806 = vunpack.c.l.b16 %v726
          %v807 = vunpack.c.l.b16 %v727
          %v808 = vunpack.c.l.b16 %v728
          %v809 = vunpack.c.l.b16 %v729
          %v810 = vunpack.c.l.b16 %v730
          %v811 = vunpack.c.l.b16 %v731
          %v812 = vunpack.c.l.b16 %v732
          %v813 = vunpack.c.l.b16 %v733
          %v814 = vunpack.c.l.b16 %v734
          %v815 = vunpack.c.l.b16 %v735
          %v816 = vunpack.c.l.b16 %v736
          %v817 = vunpack.c.l.b16 %v737
          %v818 = vunpack.c.l.b16 %v738
          %v819 = vpack.c.b16 %v804, %v803
          %v820 = vpack.c.b16 %v806, %v805
          %v821 = vpack.c.b16 %v808, %v807
          %v822 = vpack.c.b16 %v810, %v809
          %v823 = vpack.c.b16 %v812, %v811
          %v824 = vpack.c.b16 %v814, %v813
          %v825 = vpack.c.b16 %v816, %v815
          %v826 = vpack.c.b16 %v818, %v817
          %835 = vmatpush.bf16.msra.mxu0 %v826
          %836 = vmatpush.bf16.msra.mxu0 %v825
          %837 = vmatpush.bf16.msra.mxu0 %v824
          %838 = vmatpush.bf16.msra.mxu0 %v823
          %839 = vmatpush.bf16.msra.mxu0 %v822
          %840 = vmatpush.bf16.msra.mxu0 %v821
          %841 = vmatpush.bf16.msra.mxu0 %v820
          %842 = vmatpush.bf16.msra.mxu0 %v819
          %843 = vmatmul.bf16.gmra.mxu0 %v771
          %v844 = vpop.f32.mrf.mxu0
          %v845 = vadd.f32 0.0, %v844
          %v846 = vpop.f32.mrf.mxu0
          %v847 = vadd.f32 0.0, %v846
          %848 = vmatmul.bf16.gmra.mxu0 %v772
          %v849 = vpop.f32.mrf.mxu0
          %v850 = vadd.f32 0.0, %v849
          %v851 = vpop.f32.mrf.mxu0
          %v852 = vadd.f32 0.0, %v851
          %853 = vmatmul.bf16.gmra.mxu0 %v773
          %v854 = vpop.f32.mrf.mxu0
          %v855 = vadd.f32 0.0, %v854
          %v856 = vpop.f32.mrf.mxu0
          %v857 = vadd.f32 0.0, %v856
          %858 = vmatmul.bf16.gmra.mxu0 %v774
          %v859 = vpop.f32.mrf.mxu0
          %v860 = vadd.f32 0.0, %v859
          %v861 = vpop.f32.mrf.mxu0
          %v862 = vadd.f32 0.0, %v861
          %863 = vmatmul.bf16.gmra.mxu0 %v775
          %v864 = vpop.f32.mrf.mxu0
          %v865 = vadd.f32 0.0, %v864
          %v866 = vpop.f32.mrf.mxu0
          %v867 = vadd.f32 0.0, %v866
          %868 = vmatmul.bf16.gmra.mxu0 %v776
          %v869 = vpop.f32.mrf.mxu0
          %v870 = vadd.f32 0.0, %v869
          %v871 = vpop.f32.mrf.mxu0
          %v872 = vadd.f32 0.0, %v871
          %873 = vmatmul.bf16.gmra.mxu0 %v777
          %v874 = vpop.f32.mrf.mxu0
          %v875 = vadd.f32 0.0, %v874
          %v876 = vpop.f32.mrf.mxu0
          %v877 = vadd.f32 0.0, %v876
          %878 = vmatmul.bf16.gmra.mxu0 %v778
          %v879 = vpop.f32.mrf.mxu0
          %v880 = vadd.f32 0.0, %v879
          %v881 = vpop.f32.mrf.mxu0
          %v882 = vadd.f32 0.0, %v881
          %883 = vdwg.mxu0
          %v900 = vunpack.c.l.b16 %v691
          %v901 = vunpack.c.l.b16 %v692
          %v902 = vunpack.c.l.b16 %v693
          %v903 = vunpack.c.l.b16 %v694
          %v904 = vunpack.c.l.b16 %v695
          %v905 = vunpack.c.l.b16 %v696
          %v906 = vunpack.c.l.b16 %v697
          %v907 = vunpack.c.l.b16 %v698
          %v908 = vunpack.c.l.b16 %v699
          %v909 = vunpack.c.l.b16 %v700
          %v910 = vunpack.c.l.b16 %v701
          %v911 = vunpack.c.l.b16 %v702
          %v912 = vunpack.c.l.b16 %v703
          %v913 = vunpack.c.l.b16 %v704
          %v914 = vunpack.c.l.b16 %v705
          %v915 = vunpack.c.l.b16 %v706
          %v916 = vpack.c.b16 %v901, %v900
          %v917 = vpack.c.b16 %v903, %v902
          %v918 = vpack.c.b16 %v905, %v904
          %v919 = vpack.c.b16 %v907, %v906
          %v920 = vpack.c.b16 %v909, %v908
          %v921 = vpack.c.b16 %v911, %v910
          %v922 = vpack.c.b16 %v913, %v912
          %v923 = vpack.c.b16 %v915, %v914
          %932 = vmatpush.bf16.msra.mxu0 %v923
          %933 = vmatpush.bf16.msra.mxu0 %v922
          %934 = vmatpush.bf16.msra.mxu0 %v921
          %935 = vmatpush.bf16.msra.mxu0 %v920
          %936 = vmatpush.bf16.msra.mxu0 %v919
          %937 = vmatpush.bf16.msra.mxu0 %v918
          %938 = vmatpush.bf16.msra.mxu0 %v917
          %939 = vmatpush.bf16.msra.mxu0 %v916
          %940 = vmatmul.bf16.gmra.mxu0 %v683
          %v941 = vpop.f32.mrf.mxu0
          %v942 = vadd.f32 %v845, %v941
          %v943 = vpop.f32.mrf.mxu0
          %v944 = vadd.f32 %v847, %v943
          %945 = vmatmul.bf16.gmra.mxu0 %v684
          %v946 = vpop.f32.mrf.mxu0
          %v947 = vadd.f32 %v850, %v946
          %v948 = vpop.f32.mrf.mxu0
          %v949 = vadd.f32 %v852, %v948
          %950 = vmatmul.bf16.gmra.mxu0 %v685
          %v951 = vpop.f32.mrf.mxu0
          %v952 = vadd.f32 %v855, %v951
          %v953 = vpop.f32.mrf.mxu0
          %v954 = vadd.f32 %v857, %v953
          %955 = vmatmul.bf16.gmra.mxu0 %v686
          %v956 = vpop.f32.mrf.mxu0
          %v957 = vadd.f32 %v860, %v956
          %v958 = vpop.f32.mrf.mxu0
          %v959 = vadd.f32 %v862, %v958
          %960 = vmatmul.bf16.gmra.mxu0 %v687
          %v961 = vpop.f32.mrf.mxu0
          %v962 = vadd.f32 %v865, %v961
          %v963 = vpop.f32.mrf.mxu0
          %v964 = vadd.f32 %v867, %v963
          %965 = vmatmul.bf16.gmra.mxu0 %v688
          %v966 = vpop.f32.mrf.mxu0
          %v967 = vadd.f32 %v870, %v966
          %v968 = vpop.f32.mrf.mxu0
          %v969 = vadd.f32 %v872, %v968
          %970 = vmatmul.bf16.gmra.mxu0 %v689
          %v971 = vpop.f32.mrf.mxu0
          %v972 = vadd.f32 %v875, %v971
          %v973 = vpop.f32.mrf.mxu0
          %v974 = vadd.f32 %v877, %v973
          %975 = vmatmul.bf16.gmra.mxu0 %v690
          %v976 = vpop.f32.mrf.mxu0
          %v977 = vadd.f32 %v880, %v976
          %v978 = vpop.f32.mrf.mxu0
          %v979 = vadd.f32 %v882, %v978
          %980 = vdwg.mxu0
          %v981 = vld [vmem:[%s5] sm:$0x1]
          %v983 = vperm.slane %v981, 0
          %v985 = vadd.f32 %v942, %v983
          %v986 = vadd.f32 %v944, %v983
          %v987 = vadd.f32 %v947, %v983
          %v988 = vadd.f32 %v949, %v983
          %v989 = vadd.f32 %v952, %v983
          %v990 = vadd.f32 %v954, %v983
          %v991 = vadd.f32 %v957, %v983
          %v992 = vadd.f32 %v959, %v983
          %v993 = vadd.f32 %v962, %v983
          %v994 = vadd.f32 %v964, %v983
          %v995 = vadd.f32 %v967, %v983
          %v996 = vadd.f32 %v969, %v983
          %v997 = vadd.f32 %v972, %v983
          %v998 = vadd.f32 %v974, %v983
          %v999 = vadd.f32 %v977, %v983
          %v1000 = vadd.f32 %v979, %v983
          %v1001 = vmax.f32 %v985, 0.0
          %v1002 = vmax.f32 %v986, 0.0
          %v1003 = vmax.f32 %v987, 0.0
          %v1004 = vmax.f32 %v988, 0.0
          %v1005 = vmax.f32 %v989, 0.0
          %v1006 = vmax.f32 %v990, 0.0
          %v1007 = vmax.f32 %v991, 0.0
          %v1008 = vmax.f32 %v992, 0.0
          %v1009 = vmax.f32 %v993, 0.0
          %v1010 = vmax.f32 %v994, 0.0
          %v1011 = vmax.f32 %v995, 0.0
          %v1012 = vmax.f32 %v996, 0.0
          %v1013 = vmax.f32 %v997, 0.0
          %v1014 = vmax.f32 %v998, 0.0
          %v1015 = vmax.f32 %v999, 0.0
          %v1016 = vmax.f32 %v1000, 0.0
          %v1017 = vpack.c.bf16 %v1001, %v1001
          %v1018 = vpack.c.bf16 %v1002, %v1002
          %v1019 = vpack.c.bf16 %v1003, %v1003
          %v1020 = vpack.c.bf16 %v1004, %v1004
          %v1021 = vpack.c.bf16 %v1005, %v1005
          %v1022 = vpack.c.bf16 %v1006, %v1006
          %v1023 = vpack.c.bf16 %v1007, %v1007
          %v1024 = vpack.c.bf16 %v1008, %v1008
          %v1025 = vpack.c.bf16 %v1009, %v1009
          %v1026 = vpack.c.bf16 %v1010, %v1010
          %v1027 = vpack.c.bf16 %v1011, %v1011
          %v1028 = vpack.c.bf16 %v1012, %v1012
          %v1029 = vpack.c.bf16 %v1013, %v1013
          %v1030 = vpack.c.bf16 %v1014, %v1014
          %v1031 = vpack.c.bf16 %v1015, %v1015
          %v1032 = vpack.c.bf16 %v1016, %v1016
          %1033 = vst [vmem:[%s416] sm:$0xf] %v1017
          %1034 = vst [vmem:[%s416 + $0x4] sm:$0xf] %v1018
          %1035 = vst [vmem:[%s416 + $0x8] sm:$0xf] %v1019
          %1036 = vst [vmem:[%s416 + $0xc] sm:$0xf] %v1020
          %1037 = vst [vmem:[%s416 + $0x10] sm:$0xf] %v1021
          %1038 = vst [vmem:[%s416 + $0x14] sm:$0xf] %v1022
          %1039 = vst [vmem:[%s416 + $0x18] sm:$0xf] %v1023
          %1040 = vst [vmem:[%s416 + $0x1c] sm:$0xf] %v1024
          %1041 = vst [vmem:[%s416 + $0x20] sm:$0xf] %v1025
          %1042 = vst [vmem:[%s416 + $0x24] sm:$0xf] %v1026
          %1043 = vst [vmem:[%s416 + $0x28] sm:$0xf] %v1027
          %1044 = vst [vmem:[%s416 + $0x2c] sm:$0xf] %v1028
          %1045 = vst [vmem:[%s416 + $0x30] sm:$0xf] %v1029
          %1046 = vst [vmem:[%s416 + $0x34] sm:$0xf] %v1030
          %1047 = vst [vmem:[%s416 + $0x38] sm:$0xf] %v1031
          %1048 = vst [vmem:[%s416 + $0x3c] sm:$0xf] %v1032
        $region93: #{model_forward.2} parent=80 // pred_fallthru
          _
        %s1049 = smul.u32 16, %s21
        %p1050 = scmp.lt.s32.totalorder %s1049, 31
        %s1051 = scalar_select %p1050, %s1049, 31
        %s1052 = smul.addr %s1051, 4
        %s1053 = scalar_lea.vmem %s6, %s1052
        // Predicated region
        $region94: #{model_forward.2} parent=80 // pred_check
          %p1054 = pneg %p190
        $region95: #{model_forward.2} parent=80 // pred_check_branch
          %1056 = sbr.rel (%p1054) target = $region97
        $region96: #{model_forward.2} parent=80 // pred_region
          %s1057 = smul.u32 16, %s21
        $region97: #{model_forward.2} parent=80 // pred_fallthru
          _
      $region81: #{model_forward.2} parent=5 // pred_fallthru
        _
      %p1058 = scmp.le.s32.totalorder 2, %s12
      // Predicated region
      $region98: #{model_forward.2} parent=5 // pred_check
        %p1059 = pneg %p1058
      $region99: #{model_forward.2} parent=5 // pred_check_branch
        %1061 = sbr.rel (%p1059) target = $region101
      $region100: #{model_forward.2} parent=5 // pred_region
        %s1062 = ssub.s32 %s12, 2
        // Predicated region
        $region102: #{model_forward.2} parent=100 // pred_check
          %p1063 = pneg %p196
        $region103: #{model_forward.2} parent=100 // pred_check_branch
          %1065 = sbr.rel (%p1063) target = $region105
        $region104: #{model_forward.2} parent=100 // pred_region
          %s1066 = smul.u32 16, %s23
          %p1067 = scmp.lt.s32.totalorder %s1066, 31
          %s1068 = scalar_select %p1067, %s1066, 31
          %s1069 = smul.addr %s1068, 4
          %s1070 = scalar_lea.vmem %s6, %s1069
        $region105: #{model_forward.2} parent=100 // pred_fallthru
          _
      $region101: #{model_forward.2} parent=5 // pred_fallthru
        _
    $region6: #{model_forward.2} parent=1 // loop_footer
      %s16 = sadd.s32 1, %s12
    $region7: #{model_forward.2} parent=1 // loop_footer_branch
      %11 = sbr.rel target = $region3
    $region8: #{model_forward.2} parent=1 // loop_exit
      _

// kernel: model_forward.3
$region0: #{model_forward.3}
  #allocation0 [shape = 'u32[]', space=smem, size = 0x4, offset = 0x4, fixed_abs, tag = 'smem constant byte address 0x4 - core index']
  #allocation1 [shape = 'u32[72,128]{1,0:T(1,128)}', space=vmem, size = 0x9000, scoped, tag = 'internal scratch']
  #allocation2 [shape = 'f32[128,128]{1,0:T(8,128)}', space=vmem, size = 0x10000, scoped, tag = 'scratch operand']
  %s0 = inlined_call_operand.vmem [shape: bf16[256,256], index: 0, kind: input, shape index: {}]
  %s1 = inlined_call_operand.vmem [shape: bf16[256,128], index: 1, kind: input, shape index: {}, may-alias: {1,2}]
  %s2 = inlined_call_operand.vmem [shape: bf16[256,128], index: 2, kind: input, shape index: {}, may-alias: {1,2}]
  %s3 = inlined_call_operand.vmem [shape: bf16[128,128], index: 3, kind: input, shape index: {}]
  %s4 = inlined_call_operand.vmem [shape: bf16[128,128], index: 4, kind: input, shape index: {}]
  %s5 = inlined_call_operand.vmem [shape: f32[1,128], index: 5, kind: input, shape index: {}]
  %s6 = inlined_call_operand.vmem [shape: bf16[128,128], index: 6, kind: input, shape index: {}]
  %s7 = inlined_call_operand.vmem [shape: bf16[128,128], index: 7, kind: input, shape index: {}]
  %s8 = inlined_call_operand.vmem [shape: f32[1,128], index: 8, kind: input, shape index: {}]
  %s9 = inlined_call_operand.hbm [shape: bf16[256,128], index: 9, kind: output, shape index: {0}]
  %s10 = inlined_call_operand.vmem [shape: f32[256,128], index: 10, kind: output, shape index: {1}]
  %s11 = inlined_call_operand.vmem [shape: f32[256,128], index: 11, kind: output, shape index: {2}]
  %12 = xla_tuple %s9, %s10, %s11
  %s13 = sld [smem:[#allocation0]]
  $region134: #{model_forward.3} parent=0
    _
  %s15 = ssub.s32 1, %s13
  %s16 = scalar_select 0, %s15, %s13
  $region1: #{model_forward.3} parent=0
    #allocation3 [shape = 'u8[65536]{0}', space=vmem, size = 0x10000, scoped, tag = 'input window, operand 0']
    #allocation4 [shape = 'u8[65536]{0}', space=vmem, size = 0x10000, scoped, tag = 'output window, operand 0']
    #allocation5 [shape = 's32[2]{0}', space=sflag, size = 0x8, scoped, tag = 'scoped memory for model_forward.3']
    %17 = vsyncpa [#allocation5], 0
    %s18 = scalar_lea.sflag [#allocation5], 1
    %19 = vsyncpa %s18, 0
    loop: start=0, step=1, limit=6
    $region2: #{model_forward.3} parent=1 // loop_pre_header
      _
    $region3: #{model_forward.3} parent=1 // loop_header
      %s21 = sphi 0, %s25
      %p22 = scmp.ge.s32.totalorder %s21, 6
      %s28 = sphi 0, %s40
      %s29 = sphi 0, %s36
      %s30 = sphi 0, %s28
      %s31 = sphi 0, %s29
      %s32 = sphi 0, %s30
      %s33 = sphi 0, %s31
      %s45 = sphi 0, %s47
      %s48 = sphi 0, %s45
      %s49 = sphi 0, %s48
      %s65 = sphi 0, %s49
      %s71 = sphi 0, %s73
      %s74 = sphi 0, %s71
      %s75 = sphi 0, %s74
      %s91 = sphi 0, %s75
      %s97 = sphi 0, %s99
      %s100 = sphi 0, %s97
      %s101 = sphi 0, %s100
      %s117 = sphi 0, %s101
      %s121 = sphi 0, %s121
      %s123 = sphi 0, %s121
      %s124 = sphi 0, %s123
      %s138 = sphi 0, %s124
      %s142 = sphi 0, %s142
      %s144 = sphi 0, %s142
      %s145 = sphi 0, %s144
      %s159 = sphi 0, %s145
      %s163 = sphi 0, %s163
      %s165 = sphi 0, %s163
      %s166 = sphi 0, %s165
      %s180 = sphi 0, %s166
      %s184 = sphi 0, %s184
      %s186 = sphi 0, %s184
      %s187 = sphi 0, %s186
      %s201 = sphi 0, %s187
      %s205 = sphi 0, %s205
      %s207 = sphi 0, %s205
      %s208 = sphi 0, %s207
      %s222 = sphi 0, %s208
      %s226 = sphi 0, %s226
      %s228 = sphi 0, %s226
      %s229 = sphi 0, %s228
      %s243 = sphi 0, %s229
      %s249 = sphi 0, %s251
      %s252 = sphi 0, %s249
      %s253 = sphi 0, %s252
      %s269 = sphi 0, %s253
      %s275 = sphi 0, %s277
      %s278 = sphi 0, %s275
      %s279 = sphi 0, %s278
      %s295 = sphi 0, %s279
      %s301 = sphi 0, %s303
      %s304 = sphi 0, %s301
      %s305 = sphi 0, %s304
      %s321 = sphi 0, %s305
    $region4: #{model_forward.3} parent=1 // loop_header_branch
      %24 = sbr.rel (%p22) target = $region8
    $region5: #{model_forward.3} parent=1 // loop_body
      %s26 = ssub.s32 %s21, 1
      %s27 = ssub.s32 %s21, 2
      %s34 = sadd.s32 1, %s29
      %p35 = scmp.ge.s32.totalorder %s34, 2
      %s36 = scalar_select %p35, 0, %s34
      %s37 = sadd.s32 1, %s28
      %s38 = scalar_select %p35, %s37, %s28
      %p39 = scmp.ge.s32.totalorder %s38, 2
      %s40 = scalar_select %p39, 0, %s38
      %s41 = ssub.s32 %s28, %s40
      %s42 = ssub.s32 %s29, %s36
      %s43 = sor.u32 %s41, %s42
      %p44 = scmp.eq.s32.totalorder %s43, 0
      %s46 = sadd.s32 %s45, 1
      %s47 = scalar_select %p44, %s45, %s46
      %p50 = pneg %p44
      %p51 = scmp.eq.s32.totalorder %s21, 3
      %p52 = por %p50, %p51
      %p53 = scmp.ne.s32.totalorder %s45, %s48
      %p54 = scmp.eq.s32.totalorder %s21, 0
      %p55 = por %p53, %p54
      %p56 = scmp.ne.s32.totalorder %s45, %s48
      %p57 = scmp.eq.s32.totalorder %s26, 3
      %p58 = por %p56, %p57
      %p59 = scmp.ne.s32.totalorder %s48, %s49
      %p60 = scmp.eq.s32.totalorder %s26, 0
      %p61 = por %p59, %p60
      %p62 = scmp.ne.s32.totalorder %s48, %s49
      %p63 = scmp.eq.s32.totalorder %s27, 3
      %p64 = por %p62, %p63
      %p66 = scmp.ne.s32.totalorder %s49, %s65
      %p67 = scmp.eq.s32.totalorder %s27, 0
      %p68 = por %p66, %p67
      %s69 = ssub.s32 %s29, %s36
      %p70 = scmp.eq.s32.totalorder %s69, 0
      %s72 = sadd.s32 %s71, 1
      %s73 = scalar_select %p70, %s71, %s72
      %p76 = pneg %p70
      %p77 = scmp.eq.s32.totalorder %s21, 3
      %p78 = por %p76, %p77
      %p79 = scmp.ne.s32.totalorder %s71, %s74
      %p80 = scmp.eq.s32.totalorder %s21, 0
      %p81 = por %p79, %p80
      %p82 = scmp.ne.s32.totalorder %s71, %s74
      %p83 = scmp.eq.s32.totalorder %s26, 3
      %p84 = por %p82, %p83
      %p85 = scmp.ne.s32.totalorder %s74, %s75
      %p86 = scmp.eq.s32.totalorder %s26, 0
      %p87 = por %p85, %p86
      %p88 = scmp.ne.s32.totalorder %s74, %s75
      %p89 = scmp.eq.s32.totalorder %s27, 3
      %p90 = por %p88, %p89
      %p92 = scmp.ne.s32.totalorder %s75, %s91
      %p93 = scmp.eq.s32.totalorder %s27, 0
      %p94 = por %p92, %p93
      %s95 = ssub.s32 %s28, %s40
      %p96 = scmp.eq.s32.totalorder %s95, 0
      %s98 = sadd.s32 %s97, 1
      %s99 = scalar_select %p96, %s97, %s98
      %p102 = pneg %p96
      %p103 = scmp.eq.s32.totalorder %s21, 3
      %p104 = por %p102, %p103
      %p105 = scmp.ne.s32.totalorder %s97, %s100
      %p106 = scmp.eq.s32.totalorder %s21, 0
      %p107 = por %p105, %p106
      %p108 = scmp.ne.s32.totalorder %s97, %s100
      %p109 = scmp.eq.s32.totalorder %s26, 3
      %p110 = por %p108, %p109
      %p111 = scmp.ne.s32.totalorder %s100, %s101
      %p112 = scmp.eq.s32.totalorder %s26, 0
      %p113 = por %p111, %p112
      %p114 = scmp.ne.s32.totalorder %s100, %s101
      %p115 = scmp.eq.s32.totalorder %s27, 3
      %p116 = por %p114, %p115
      %p118 = scmp.ne.s32.totalorder %s101, %s117
      %p119 = scmp.eq.s32.totalorder %s27, 0
      %p120 = por %p118, %p119
      %s122 = sadd.s32 %s121, 1
      %p125 = scmp.eq.s32.totalorder %s21, 3
      %p126 = scmp.ne.s32.totalorder %s121, %s123
      %p127 = scmp.eq.s32.totalorder %s21, 0
      %p128 = por %p126, %p127
      %p129 = scmp.ne.s32.totalorder %s121, %s123
      %p130 = scmp.eq.s32.totalorder %s26, 3
      %p131 = por %p129, %p130
      %p132 = scmp.ne.s32.totalorder %s123, %s124
      %p133 = scmp.eq.s32.totalorder %s26, 0
      %p134 = por %p132, %p133
      %p135 = scmp.ne.s32.totalorder %s123, %s124
      %p136 = scmp.eq.s32.totalorder %s27, 3
      %p137 = por %p135, %p136
      %p139 = scmp.ne.s32.totalorder %s124, %s138
      %p140 = scmp.eq.s32.totalorder %s27, 0
      %p141 = por %p139, %p140
      %s143 = sadd.s32 %s142, 1
      %p146 = scmp.eq.s32.totalorder %s21, 3
      %p147 = scmp.ne.s32.totalorder %s142, %s144
      %p148 = scmp.eq.s32.totalorder %s21, 0
      %p149 = por %p147, %p148
      %p150 = scmp.ne.s32.totalorder %s142, %s144
      %p151 = scmp.eq.s32.totalorder %s26, 3
      %p152 = por %p150, %p151
      %p153 = scmp.ne.s32.totalorder %s144, %s145
      %p154 = scmp.eq.s32.totalorder %s26, 0
      %p155 = por %p153, %p154
      %p156 = scmp.ne.s32.totalorder %s144, %s145
      %p157 = scmp.eq.s32.totalorder %s27, 3
      %p158 = por %p156, %p157
      %p160 = scmp.ne.s32.totalorder %s145, %s159
      %p161 = scmp.eq.s32.totalorder %s27, 0
      %p162 = por %p160, %p161
      %s164 = sadd.s32 %s163, 1
      %p167 = scmp.eq.s32.totalorder %s21, 3
      %p168 = scmp.ne.s32.totalorder %s163, %s165
      %p169 = scmp.eq.s32.totalorder %s21, 0
      %p170 = por %p168, %p169
      %p171 = scmp.ne.s32.totalorder %s163, %s165
      %p172 = scmp.eq.s32.totalorder %s26, 3
      %p173 = por %p171, %p172
      %p174 = scmp.ne.s32.totalorder %s165, %s166
      %p175 = scmp.eq.s32.totalorder %s26, 0
      %p176 = por %p174, %p175
      %p177 = scmp.ne.s32.totalorder %s165, %s166
      %p178 = scmp.eq.s32.totalorder %s27, 3
      %p179 = por %p177, %p178
      %p181 = scmp.ne.s32.totalorder %s166, %s180
      %p182 = scmp.eq.s32.totalorder %s27, 0
      %p183 = por %p181, %p182
      %s185 = sadd.s32 %s184, 1
      %p188 = scmp.eq.s32.totalorder %s21, 3
      %p189 = scmp.ne.s32.totalorder %s184, %s186
      %p190 = scmp.eq.s32.totalorder %s21, 0
      %p191 = por %p189, %p190
      %p192 = scmp.ne.s32.totalorder %s184, %s186
      %p193 = scmp.eq.s32.totalorder %s26, 3
      %p194 = por %p192, %p193
      %p195 = scmp.ne.s32.totalorder %s186, %s187
      %p196 = scmp.eq.s32.totalorder %s26, 0
      %p197 = por %p195, %p196
      %p198 = scmp.ne.s32.totalorder %s186, %s187
      %p199 = scmp.eq.s32.totalorder %s27, 3
      %p200 = por %p198, %p199
      %p202 = scmp.ne.s32.totalorder %s187, %s201
      %p203 = scmp.eq.s32.totalorder %s27, 0
      %p204 = por %p202, %p203
      %s206 = sadd.s32 %s205, 1
      %p209 = scmp.eq.s32.totalorder %s21, 3
      %p210 = scmp.ne.s32.totalorder %s205, %s207
      %p211 = scmp.eq.s32.totalorder %s21, 0
      %p212 = por %p210, %p211
      %p213 = scmp.ne.s32.totalorder %s205, %s207
      %p214 = scmp.eq.s32.totalorder %s26, 3
      %p215 = por %p213, %p214
      %p216 = scmp.ne.s32.totalorder %s207, %s208
      %p217 = scmp.eq.s32.totalorder %s26, 0
      %p218 = por %p216, %p217
      %p219 = scmp.ne.s32.totalorder %s207, %s208
      %p220 = scmp.eq.s32.totalorder %s27, 3
      %p221 = por %p219, %p220
      %p223 = scmp.ne.s32.totalorder %s208, %s222
      %p224 = scmp.eq.s32.totalorder %s27, 0
      %p225 = por %p223, %p224
      %s227 = sadd.s32 %s226, 1
      %p230 = scmp.eq.s32.totalorder %s21, 3
      %p231 = scmp.ne.s32.totalorder %s226, %s228
      %p232 = scmp.eq.s32.totalorder %s21, 0
      %p233 = por %p231, %p232
      %p234 = scmp.ne.s32.totalorder %s226, %s228
      %p235 = scmp.eq.s32.totalorder %s26, 3
      %p236 = por %p234, %p235
      %p237 = scmp.ne.s32.totalorder %s228, %s229
      %p238 = scmp.eq.s32.totalorder %s26, 0
      %p239 = por %p237, %p238
      %p240 = scmp.ne.s32.totalorder %s228, %s229
      %p241 = scmp.eq.s32.totalorder %s27, 3
      %p242 = por %p240, %p241
      %p244 = scmp.ne.s32.totalorder %s229, %s243
      %p245 = scmp.eq.s32.totalorder %s27, 0
      %p246 = por %p244, %p245
      %s247 = ssub.s32 %s28, %s40
      %p248 = scmp.eq.s32.totalorder %s247, 0
      %s250 = sadd.s32 %s249, 1
      %s251 = scalar_select %p248, %s249, %s250
      %p254 = pneg %p248
      %p255 = scmp.eq.s32.totalorder %s21, 3
      %p256 = por %p254, %p255
      %p257 = scmp.ne.s32.totalorder %s249, %s252
      %p258 = scmp.eq.s32.totalorder %s21, 0
      %p259 = por %p257, %p258
      %p260 = scmp.ne.s32.totalorder %s249, %s252
      %p261 = scmp.eq.s32.totalorder %s26, 3
      %p262 = por %p260, %p261
      %p263 = scmp.ne.s32.totalorder %s252, %s253
      %p264 = scmp.eq.s32.totalorder %s26, 0
      %p265 = por %p263, %p264
      %p266 = scmp.ne.s32.totalorder %s252, %s253
      %p267 = scmp.eq.s32.totalorder %s27, 3
      %p268 = por %p266, %p267
      %p270 = scmp.ne.s32.totalorder %s253, %s269
      %p271 = scmp.eq.s32.totalorder %s27, 0
      %p272 = por %p270, %p271
      %s273 = ssub.s32 %s28, %s40
      %p274 = scmp.eq.s32.totalorder %s273, 0
      %s276 = sadd.s32 %s275, 1
      %s277 = scalar_select %p274, %s275, %s276
      %p280 = pneg %p274
      %p281 = scmp.eq.s32.totalorder %s21, 3
      %p282 = por %p280, %p281
      %p283 = scmp.ne.s32.totalorder %s275, %s278
      %p284 = scmp.eq.s32.totalorder %s21, 0
      %p285 = por %p283, %p284
      %p286 = scmp.ne.s32.totalorder %s275, %s278
      %p287 = scmp.eq.s32.totalorder %s26, 3
      %p288 = por %p286, %p287
      %p289 = scmp.ne.s32.totalorder %s278, %s279
      %p290 = scmp.eq.s32.totalorder %s26, 0
      %p291 = por %p289, %p290
      %p292 = scmp.ne.s32.totalorder %s278, %s279
      %p293 = scmp.eq.s32.totalorder %s27, 3
      %p294 = por %p292, %p293
      %p296 = scmp.ne.s32.totalorder %s279, %s295
      %p297 = scmp.eq.s32.totalorder %s27, 0
      %p298 = por %p296, %p297
      %s299 = ssub.s32 %s28, %s40
      %p300 = scmp.eq.s32.totalorder %s299, 0
      %s302 = sadd.s32 %s301, 1
      %s303 = scalar_select %p300, %s301, %s302
      %p306 = pneg %p300
      %p307 = scmp.eq.s32.totalorder %s21, 3
      %p308 = por %p306, %p307
      %p309 = scmp.ne.s32.totalorder %s301, %s304
      %p310 = scmp.eq.s32.totalorder %s21, 0
      %p311 = por %p309, %p310
      %p312 = scmp.ne.s32.totalorder %s301, %s304
      %p313 = scmp.eq.s32.totalorder %s26, 3
      %p314 = por %p312, %p313
      %p315 = scmp.ne.s32.totalorder %s304, %s305
      %p316 = scmp.eq.s32.totalorder %s26, 0
      %p317 = por %p315, %p316
      %p318 = scmp.ne.s32.totalorder %s304, %s305
      %p319 = scmp.eq.s32.totalorder %s27, 3
      %p320 = por %p318, %p319
      %p322 = scmp.ne.s32.totalorder %s305, %s321
      %p323 = scmp.eq.s32.totalorder %s27, 0
      %p324 = por %p322, %p323
      %p325 = scmp.le.s32.totalorder 1, %s21
      %p326 = scmp.lt.s32.totalorder %s21, 5
      %p327 = pnand %p325, %p326
      %p328 = pneg %p327
      // Predicated region
      $region9: #{model_forward.3} parent=5 // pred_check
        _
      $region10: #{model_forward.3} parent=5 // pred_check_branch
        %330 = sbr.rel (%p327) target = $region12
      $region11: #{model_forward.3} parent=5 // pred_region
        %s331 = ssub.s32 %s21, 1
        // Predicated region
        $region13: #{model_forward.3} parent=11 // pred_check
          %p332 = pneg %p134
        $region14: #{model_forward.3} parent=11 // pred_check_branch
          %334 = sbr.rel (%p332) target = $region16
        $region15: #{model_forward.3} parent=11 // pred_region
          _
        $region16: #{model_forward.3} parent=11 // pred_fallthru
          _
        // Predicated region
        $region17: #{model_forward.3} parent=11 // pred_check
          %p335 = pneg %p155
        $region18: #{model_forward.3} parent=11 // pred_check_branch
          %337 = sbr.rel (%p335) target = $region20
        $region19: #{model_forward.3} parent=11 // pred_region
          _
        $region20: #{model_forward.3} parent=11 // pred_fallthru
          _
        // Predicated region
        $region21: #{model_forward.3} parent=11 // pred_check
          %p338 = pneg %p176
        $region22: #{model_forward.3} parent=11 // pred_check_branch
          %340 = sbr.rel (%p338) target = $region24
        $region23: #{model_forward.3} parent=11 // pred_region
          _
        $region24: #{model_forward.3} parent=11 // pred_fallthru
          _
        // Predicated region
        $region25: #{model_forward.3} parent=11 // pred_check
          %p341 = pneg %p197
        $region26: #{model_forward.3} parent=11 // pred_check_branch
          %343 = sbr.rel (%p341) target = $region28
        $region27: #{model_forward.3} parent=11 // pred_region
          _
        $region28: #{model_forward.3} parent=11 // pred_fallthru
          _
        // Predicated region
        $region29: #{model_forward.3} parent=11 // pred_check
          %p344 = pneg %p218
        $region30: #{model_forward.3} parent=11 // pred_check_branch
          %346 = sbr.rel (%p344) target = $region32
        $region31: #{model_forward.3} parent=11 // pred_region
          _
        $region32: #{model_forward.3} parent=11 // pred_fallthru
          _
        // Predicated region
        $region33: #{model_forward.3} parent=11 // pred_check
          %p347 = pneg %p239
        $region34: #{model_forward.3} parent=11 // pred_check_branch
          %349 = sbr.rel (%p347) target = $region36
        $region35: #{model_forward.3} parent=11 // pred_region
          _
        $region36: #{model_forward.3} parent=11 // pred_fallthru
          _
      $region12: #{model_forward.3} parent=5 // pred_fallthru
        _
      %p350 = scmp.lt.s32.totalorder %s21, 4
      // Predicated region
      $region37: #{model_forward.3} parent=5 // pred_check
        %p351 = pneg %p350
      $region38: #{model_forward.3} parent=5 // pred_check_branch
        %353 = sbr.rel (%p351) target = $region40
      $region39: #{model_forward.3} parent=5 // pred_region
        // Predicated region
        $region41: #{model_forward.3} parent=39 // pred_check
          %p354 = pneg %p55
        $region42: #{model_forward.3} parent=39 // pred_check_branch
          %356 = sbr.rel (%p354) target = $region44
        $region43: #{model_forward.3} parent=39 // pred_region
          %s357 = sand.u32 %s45, 1
          %s358 = sand.u32 %s45, 1
          %s359 = smul.addr %s358, 64
          %s360 = scalar_lea.vmem [#allocation3], %s359
          %s361 = smul.u32 16, %s28
          %s362 = smul.addr %s361, 2
          %s363 = sadd.s32 %s29, %s362
          %s364 = smul.addr %s363, 4
          %s365 = scalar_lea.vmem %s0, %s364
          // Predicated region
          $region45: #{model_forward.3} parent=43 // pred_check
            _
          $region46: #{model_forward.3} parent=43 // pred_check_branch
            %367 = sbr.rel (0) target = $region48
          $region47: #{model_forward.3} parent=43 // pred_region
            // Predicated region
            $region49: #{model_forward.3} parent=47 // pred_check
              _
            $region50: #{model_forward.3} parent=47 // pred_check_branch
              %369 = sbr.rel target = $region52
            $region51: #{model_forward.3} parent=47 // pred_region
              // Predicated region
              $region64: #{model_forward.3} parent=51 // pred_check
                _
              $region65: #{model_forward.3} parent=51 // pred_check_branch
                %415 = sbr.rel (0) target = $region67
              $region66: #{model_forward.3} parent=51 // pred_region
                loop: start=0, step=1, limit=1
                $region68: #{model_forward.3} parent=66 // loop_pre_header
                  _
                $region69: #{model_forward.3} parent=66 // loop_header
                  %s417 = sphi 0, %s421
                  %p418 = scmp.ge.s32.totalorder %s417, 1
                  %s422 = sphi %s365, %s365
                  %s423 = sphi %s360, %s360
                $region70: #{model_forward.3} parent=66 // loop_header_branch
                  %420 = sbr.rel (%p418) target = $region74
                $region71: #{model_forward.3} parent=66 // loop_body
                  _
                $region72: #{model_forward.3} parent=66 // loop_footer
                  %s421 = sadd.s32 1, %s417
                $region73: #{model_forward.3} parent=66 // loop_footer_branch
                  %416 = sbr.rel target = $region69
                $region74: #{model_forward.3} parent=66 // loop_exit
                  _
                %s425 = ssub.s32 16, 1
                loop: start=0, step=1, limit=1
                $region75: #{model_forward.3} parent=66 // loop_pre_header
                  _
                $region76: #{model_forward.3} parent=66 // loop_header
                  %s427 = sphi 0, %s431
                  %p428 = scmp.ge.s32.totalorder %s427, 1
                  %s432 = sphi %s365, %s365
                  %s433 = sphi %s360, %s360
                $region77: #{model_forward.3} parent=66 // loop_header_branch
                  %430 = sbr.rel (%p428) target = $region81
                $region78: #{model_forward.3} parent=66 // loop_body
                  %v434 = vld [vmem:[%s432] sm:%s425]
                  %435 = vst [vmem:[%s433] sm:%s425] %v434
                  %v436 = vld [vmem:[%s432 + $0x8] sm:%s425]
                  %437 = vst [vmem:[%s433 + $0x4] sm:%s425] %v436
                  %v438 = vld [vmem:[%s432 + $0x10] sm:%s425]
                  %439 = vst [vmem:[%s433 + $0x8] sm:%s425] %v438
                  %v440 = vld [vmem:[%s432 + $0x18] sm:%s425]
                  %441 = vst [vmem:[%s433 + $0xc] sm:%s425] %v440
                  %v442 = vld [vmem:[%s432 + $0x20] sm:%s425]
                  %443 = vst [vmem:[%s433 + $0x10] sm:%s425] %v442
                  %v444 = vld [vmem:[%s432 + $0x28] sm:%s425]
                  %445 = vst [vmem:[%s433 + $0x14] sm:%s425] %v444
                  %v446 = vld [vmem:[%s432 + $0x30] sm:%s425]
                  %447 = vst [vmem:[%s433 + $0x18] sm:%s425] %v446
                  %v448 = vld [vmem:[%s432 + $0x38] sm:%s425]
                  %449 = vst [vmem:[%s433 + $0x1c] sm:%s425] %v448
                  %v450 = vld [vmem:[%s432 + $0x40] sm:%s425]
                  %451 = vst [vmem:[%s433 + $0x20] sm:%s425] %v450
                  %v452 = vld [vmem:[%s432 + $0x48] sm:%s425]
                  %453 = vst [vmem:[%s433 + $0x24] sm:%s425] %v452
                  %v454 = vld [vmem:[%s432 + $0x50] sm:%s425]
                  %455 = vst [vmem:[%s433 + $0x28] sm:%s425] %v454
                  %v456 = vld [vmem:[%s432 + $0x58] sm:%s425]
                  %457 = vst [vmem:[%s433 + $0x2c] sm:%s425] %v456
                  %v458 = vld [vmem:[%s432 + $0x60] sm:%s425]
                  %459 = vst [vmem:[%s433 + $0x30] sm:%s425] %v458
                  %v460 = vld [vmem:[%s432 + $0x68] sm:%s425]
                  %461 = vst [vmem:[%s433 + $0x34] sm:%s425] %v460
                  %v462 = vld [vmem:[%s432 + $0x70] sm:%s425]
                  %463 = vst [vmem:[%s433 + $0x38] sm:%s425] %v462
                  %v464 = vld [vmem:[%s432 + $0x78] sm:%s425]
                  %465 = vst [vmem:[%s433 + $0x3c] sm:%s425] %v464
                $region79: #{model_forward.3} parent=66 // loop_footer
                  %s431 = sadd.s32 1, %s427
                $region80: #{model_forward.3} parent=66 // loop_footer_branch
                  %426 = sbr.rel target = $region76
                $region81: #{model_forward.3} parent=66 // loop_exit
                  _
              $region67: #{model_forward.3} parent=51 // pred_fallthru
                _
            $region52: #{model_forward.3} parent=47 // pred_fallthru
              _
            // Predicated region
            $region53: #{model_forward.3} parent=47 // pred_check
              _
            $region54: #{model_forward.3} parent=47 // pred_check_branch
              %371 = sbr.rel (0) target = $region56
            $region55: #{model_forward.3} parent=47 // pred_region
              %s373 = ssub.s32 16, 1
              loop: start=0, step=1, limit=1
              $region57: #{model_forward.3} parent=55 // loop_pre_header
                _
              $region58: #{model_forward.3} parent=55 // loop_header
                %s375 = sphi 0, %s379
                %p376 = scmp.ge.s32.totalorder %s375, 1
                %s380 = sphi %s365, %s365
                %s381 = sphi %s360, %s360
              $region59: #{model_forward.3} parent=55 // loop_header_branch
                %378 = sbr.rel (%p376) target = $region63
              $region60: #{model_forward.3} parent=55 // loop_body
                %v382 = vld [vmem:[%s380] sm:%s373]
                %383 = vst [vmem:[%s381] sm:%s373] %v382
                %v384 = vld [vmem:[%s380 + $0x8] sm:%s373]
                %385 = vst [vmem:[%s381 + $0x4] sm:%s373] %v384
                %v386 = vld [vmem:[%s380 + $0x10] sm:%s373]
                %387 = vst [vmem:[%s381 + $0x8] sm:%s373] %v386
                %v388 = vld [vmem:[%s380 + $0x18] sm:%s373]
                %389 = vst [vmem:[%s381 + $0xc] sm:%s373] %v388
                %v390 = vld [vmem:[%s380 + $0x20] sm:%s373]
                %391 = vst [vmem:[%s381 + $0x10] sm:%s373] %v390
                %v392 = vld [vmem:[%s380 + $0x28] sm:%s373]
                %393 = vst [vmem:[%s381 + $0x14] sm:%s373] %v392
                %v394 = vld [vmem:[%s380 + $0x30] sm:%s373]
                %395 = vst [vmem:[%s381 + $0x18] sm:%s373] %v394
                %v396 = vld [vmem:[%s380 + $0x38] sm:%s373]
                %397 = vst [vmem:[%s381 + $0x1c] sm:%s373] %v396
                %v398 = vld [vmem:[%s380 + $0x40] sm:%s373]
                %399 = vst [vmem:[%s381 + $0x20] sm:%s373] %v398
                %v400 = vld [vmem:[%s380 + $0x48] sm:%s373]
                %401 = vst [vmem:[%s381 + $0x24] sm:%s373] %v400
                %v402 = vld [vmem:[%s380 + $0x50] sm:%s373]
                %403 = vst [vmem:[%s381 + $0x28] sm:%s373] %v402
                %v404 = vld [vmem:[%s380 + $0x58] sm:%s373]
                %405 = vst [vmem:[%s381 + $0x2c] sm:%s373] %v404
                %v406 = vld [vmem:[%s380 + $0x60] sm:%s373]
                %407 = vst [vmem:[%s381 + $0x30] sm:%s373] %v406
                %v408 = vld [vmem:[%s380 + $0x68] sm:%s373]
                %409 = vst [vmem:[%s381 + $0x34] sm:%s373] %v408
                %v410 = vld [vmem:[%s380 + $0x70] sm:%s373]
                %411 = vst [vmem:[%s381 + $0x38] sm:%s373] %v410
                %v412 = vld [vmem:[%s380 + $0x78] sm:%s373]
                %413 = vst [vmem:[%s381 + $0x3c] sm:%s373] %v412
              $region61: #{model_forward.3} parent=55 // loop_footer
                %s379 = sadd.s32 1, %s375
              $region62: #{model_forward.3} parent=55 // loop_footer_branch
                %374 = sbr.rel target = $region58
              $region63: #{model_forward.3} parent=55 // loop_exit
                _
            $region56: #{model_forward.3} parent=47 // pred_fallthru
              _
          $region48: #{model_forward.3} parent=43 // pred_fallthru
            _
          %466 = vnop
        $region44: #{model_forward.3} parent=39 // pred_fallthru
          _
        // Predicated region
        $region82: #{model_forward.3} parent=39 // pred_check
          %p467 = pneg %p81
        $region83: #{model_forward.3} parent=39 // pred_check_branch
          %469 = sbr.rel (%p467) target = $region85
        $region84: #{model_forward.3} parent=39 // pred_region
          %s470 = smul.u32 16, %s29
          %p471 = scmp.lt.s32.totalorder %s470, 31
          %s472 = scalar_select %p471, %s470, 31
          %s473 = smul.addr %s472, 4
          %s474 = scalar_lea.vmem %s1, %s473
          %s475 = smul.u32 16, %s29
        $region85: #{model_forward.3} parent=39 // pred_fallthru
          _
        // Predicated region
        $region86: #{model_forward.3} parent=39 // pred_check
          %p476 = pneg %p107
        $region87: #{model_forward.3} parent=39 // pred_check_branch
          %478 = sbr.rel (%p476) target = $region89
        $region88: #{model_forward.3} parent=39 // pred_region
          %s479 = smul.u32 16, %s28
          %p480 = scmp.lt.s32.totalorder %s479, 31
          %s481 = scalar_select %p480, %s479, 31
          %s482 = smul.addr %s481, 4
          %s483 = scalar_lea.vmem %s2, %s482
          %s484 = smul.u32 16, %s28
        $region89: #{model_forward.3} parent=39 // pred_fallthru
          _
      $region40: #{model_forward.3} parent=5 // pred_fallthru
        _
      %p485 = scmp.le.s32.totalorder 1, %s21
      %p486 = scmp.lt.s32.totalorder %s21, 5
      %p487 = pnand %p485, %p486
      %p488 = pneg %p487
      // Predicated region
      $region90: #{model_forward.3} parent=5 // pred_check
        _
      $region91: #{model_forward.3} parent=5 // pred_check_branch
        %490 = sbr.rel (%p487) target = $region93
      $region92: #{model_forward.3} parent=5 // pred_region
        %s491 = ssub.s32 %s21, 1
        %s492 = sand.u32 %s48, 1
        %s493 = sand.u32 %s48, 1
        %s494 = smul.addr %s493, 64
        %s495 = scalar_lea.vmem [#allocation3], %s494
        // Predicated region
        $region94: #{model_forward.3} parent=92 // pred_check
          %p496 = pneg %p61
        $region95: #{model_forward.3} parent=92 // pred_check_branch
          %498 = sbr.rel (%p496) target = $region97
        $region96: #{model_forward.3} parent=92 // pred_region
          _
        $region97: #{model_forward.3} parent=92 // pred_fallthru
          _
        %s499 = sand.u32 %s48, 1
        %s500 = sand.u32 %s48, 1
        %s501 = smul.addr %s500, 64
        %s502 = scalar_lea.vmem [#allocation3], %s501
        %p503 = pneg %p61
        %p504 = pneg %p58
        %s505 = smul.u32 16, %s31
        %p506 = scmp.lt.s32.totalorder %s505, 31
        %s507 = scalar_select %p506, %s505, 31
        %s508 = smul.addr %s507, 4
        %s509 = scalar_lea.vmem %s1, %s508
        %p510 = pneg %p87
        %p511 = pneg %p84
        %s512 = smul.u32 16, %s30
        %p513 = scmp.lt.s32.totalorder %s512, 31
        %s514 = scalar_select %p513, %s512, 31
        %s515 = smul.addr %s514, 4
        %s516 = scalar_lea.vmem %s2, %s515
        %p517 = pneg %p113
        %p518 = pneg %p110
        %p519 = pneg %p134
        %p520 = pneg %p131
        %p521 = pneg %p155
        %p522 = pneg %p152
        %p523 = pneg %p176
        %p524 = pneg %p173
        %p525 = pneg %p197
        %p526 = pneg %p194
        %p527 = pneg %p218
        %p528 = pneg %p215
        %p529 = pneg %p239
        %p530 = pneg %p236
        %p531 = pneg %p265
        %p532 = pneg %p262
        %s533 = sand.u32 %s252, 1
        %s534 = scalar_lea.sflag [#allocation5], %s533
        %s535 = sand.u32 %s252, 1
        %s536 = smul.addr %s535, 64
        %s537 = scalar_lea.vmem [#allocation4], %s536
        %p538 = pneg %p291
        %p539 = pneg %p288
        %s540 = smul.u32 16, %s30
        %p541 = scmp.lt.s32.totalorder %s540, 31
        %s542 = scalar_select %p541, %s540, 31
        %s543 = smul.addr %s542, 8
        %s544 = scalar_lea.vmem %s10, %s543
        %p545 = pneg %p317
        %p546 = pneg %p314
        %s547 = smul.u32 16, %s30
        %p548 = scmp.lt.s32.totalorder %s547, 31
        %s549 = scalar_select %p548, %s547, 31
        %s550 = smul.addr %s549, 8
        %s551 = scalar_lea.vmem %s11, %s550
        %s552 = smul.u32 16, %s30
        %s553 = smul.u32 16, %s31
        %p554 = scmp.lt.s32.totalorder %s553, 31
        %s555 = scalar_select %p554, %s553, 31
        %s556 = smul.addr %s555, 4
        %s557 = scalar_lea.vmem %s1, %s556
        %s558 = smul.u32 16, %s31
        %s559 = smul.u32 16, %s30
        %p560 = scmp.lt.s32.totalorder %s559, 31
        %s561 = scalar_select %p560, %s559, 31
        %s562 = smul.addr %s561, 4
        %s563 = scalar_lea.vmem %s2, %s562
        %s564 = smul.u32 16, %s30
        %s565 = smul.u32 16, %s30
        %s566 = smul.u32 16, %s30
        %p567 = scmp.lt.s32.totalorder %s566, 31
        %s568 = scalar_select %p567, %s566, 31
        %s569 = smul.addr %s568, 8
        %s570 = scalar_lea.vmem %s10, %s569
        %s571 = smul.u32 16, %s30
        %s572 = smul.u32 16, %s30
        %p573 = scmp.lt.s32.totalorder %s572, 31
        %s574 = scalar_select %p573, %s572, 31
        %s575 = smul.addr %s574, 8
        %s576 = scalar_lea.vmem %s11, %s575
        %s577 = smul.u32 16, %s30
        %p578 = scmp.eq.s32.totalorder %s31, 0
        // Predicated region
        $region98: #{model_forward.3} parent=92 // pred_check
          %p579 = pneg %p578
        $region99: #{model_forward.3} parent=92 // pred_check_branch
          %581 = sbr.rel (%p579) target = $region101
        $region100: #{model_forward.3} parent=92 // pred_region
          %582 = vst [vmem:[#allocation2] sm:$0xff] 0.0
          %583 = vst [vmem:[#allocation2 + $0x8] sm:$0xff] 0.0
          %584 = vst [vmem:[#allocation2 + $0x10] sm:$0xff] 0.0
          %585 = vst [vmem:[#allocation2 + $0x18] sm:$0xff] 0.0
          %586 = vst [vmem:[#allocation2 + $0x20] sm:$0xff] 0.0
          %587 = vst [vmem:[#allocation2 + $0x28] sm:$0xff] 0.0
          %588 = vst [vmem:[#allocation2 + $0x30] sm:$0xff] 0.0
          %589 = vst [vmem:[#allocation2 + $0x38] sm:$0xff] 0.0
          %590 = vst [vmem:[#allocation2 + $0x40] sm:$0xff] 0.0
          %591 = vst [vmem:[#allocation2 + $0x48] sm:$0xff] 0.0
          %592 = vst [vmem:[#allocation2 + $0x50] sm:$0xff] 0.0
          %593 = vst [vmem:[#allocation2 + $0x58] sm:$0xff] 0.0
          %594 = vst [vmem:[#allocation2 + $0x60] sm:$0xff] 0.0
          %595 = vst [vmem:[#allocation2 + $0x68] sm:$0xff] 0.0
          %596 = vst [vmem:[#allocation2 + $0x70] sm:$0xff] 0.0
          %597 = vst [vmem:[#allocation2 + $0x78] sm:$0xff] 0.0
        $region101: #{model_forward.3} parent=92 // pred_fallthru
          _
        %v598 = vld [vmem:[#allocation2] sm:$0xff]
        %v599 = vld [vmem:[#allocation2 + $0x8] sm:$0xff]
        %v600 = vld [vmem:[#allocation2 + $0x10] sm:$0xff]
        %v601 = vld [vmem:[#allocation2 + $0x18] sm:$0xff]
        %v602 = vld [vmem:[#allocation2 + $0x20] sm:$0xff]
        %v603 = vld [vmem:[#allocation2 + $0x28] sm:$0xff]
        %v604 = vld [vmem:[#allocation2 + $0x30] sm:$0xff]
        %v605 = vld [vmem:[#allocation2 + $0x38] sm:$0xff]
        %v606 = vld [vmem:[#allocation2 + $0x40] sm:$0xff]
        %v607 = vld [vmem:[#allocation2 + $0x48] sm:$0xff]
        %v608 = vld [vmem:[#allocation2 + $0x50] sm:$0xff]
        %v609 = vld [vmem:[#allocation2 + $0x58] sm:$0xff]
        %v610 = vld [vmem:[#allocation2 + $0x60] sm:$0xff]
        %v611 = vld [vmem:[#allocation2 + $0x68] sm:$0xff]
        %v612 = vld [vmem:[#allocation2 + $0x70] sm:$0xff]
        %v613 = vld [vmem:[#allocation2 + $0x78] sm:$0xff]
        %v614 = vld [vmem:[%s495] sm:$0xf]
        %v615 = vld [vmem:[%s495 + $0x4] sm:$0xf]
        %v616 = vld [vmem:[%s495 + $0x8] sm:$0xf]
        %v617 = vld [vmem:[%s495 + $0xc] sm:$0xf]
        %v618 = vld [vmem:[%s495 + $0x10] sm:$0xf]
        %v619 = vld [vmem:[%s495 + $0x14] sm:$0xf]
        %v620 = vld [vmem:[%s495 + $0x18] sm:$0xf]
        %v621 = vld [vmem:[%s495 + $0x1c] sm:$0xf]
        %v622 = vld [vmem:[%s495 + $0x20] sm:$0xf]
        %v623 = vld [vmem:[%s495 + $0x24] sm:$0xf]
        %v624 = vld [vmem:[%s495 + $0x28] sm:$0xf]
        %v625 = vld [vmem:[%s495 + $0x2c] sm:$0xf]
        %v626 = vld [vmem:[%s495 + $0x30] sm:$0xf]
        %v627 = vld [vmem:[%s495 + $0x34] sm:$0xf]
        %v628 = vld [vmem:[%s495 + $0x38] sm:$0xf]
        %v629 = vld [vmem:[%s495 + $0x3c] sm:$0xf]
        %v630 = vld [vmem:[%s557] sm:$0xf]
        %v631 = vld [vmem:[%s557 + $0x4] sm:$0xf]
        %v632 = vld [vmem:[%s557 + $0x8] sm:$0xf]
        %v633 = vld [vmem:[%s557 + $0xc] sm:$0xf]
        %v634 = vld [vmem:[%s557 + $0x10] sm:$0xf]
        %v635 = vld [vmem:[%s557 + $0x14] sm:$0xf]
        %v636 = vld [vmem:[%s557 + $0x18] sm:$0xf]
        %v637 = vld [vmem:[%s557 + $0x1c] sm:$0xf]
        %v638 = vld [vmem:[%s557 + $0x20] sm:$0xf]
        %v639 = vld [vmem:[%s557 + $0x24] sm:$0xf]
        %v640 = vld [vmem:[%s557 + $0x28] sm:$0xf]
        %v641 = vld [vmem:[%s557 + $0x2c] sm:$0xf]
        %v642 = vld [vmem:[%s557 + $0x30] sm:$0xf]
        %v643 = vld [vmem:[%s557 + $0x34] sm:$0xf]
        %v644 = vld [vmem:[%s557 + $0x38] sm:$0xf]
        %v645 = vld [vmem:[%s557 + $0x3c] sm:$0xf]
        %v662 = vunpack.c.l.b16 %v614
        %v663 = vunpack.c.l.b16 %v615
        %v664 = vunpack.c.l.b16 %v616
        %v665 = vunpack.c.l.b16 %v617
        %v666 = vunpack.c.l.b16 %v618
        %v667 = vunpack.c.l.b16 %v619
        %v668 = vunpack.c.l.b16 %v620
        %v669 = vunpack.c.l.b16 %v621
        %v670 = vunpack.c.l.b16 %v622
        %v671 = vunpack.c.l.b16 %v623
        %v672 = vunpack.c.l.b16 %v624
        %v673 = vunpack.c.l.b16 %v625
        %v674 = vunpack.c.l.b16 %v626
        %v675 = vunpack.c.l.b16 %v627
        %v676 = vunpack.c.l.b16 %v628
        %v677 = vunpack.c.l.b16 %v629
        %v678 = vpack.c.b16 %v663, %v662
        %v679 = vpack.c.b16 %v665, %v664
        %v680 = vpack.c.b16 %v667, %v666
        %v681 = vpack.c.b16 %v669, %v668
        %v682 = vpack.c.b16 %v671, %v670
        %v683 = vpack.c.b16 %v673, %v672
        %v684 = vpack.c.b16 %v675, %v674
        %v685 = vpack.c.b16 %v677, %v676
        %v710 = vunpack.c.l.b16 %v630
        %v711 = vunpack.c.l.b16 %v631
        %v712 = vunpack.c.l.b16 %v632
        %v713 = vunpack.c.l.b16 %v633
        %v714 = vunpack.c.l.b16 %v634
        %v715 = vunpack.c.l.b16 %v635
        %v716 = vunpack.c.l.b16 %v636
        %v717 = vunpack.c.l.b16 %v637
        %v718 = vunpack.c.l.b16 %v638
        %v719 = vunpack.c.l.b16 %v639
        %v720 = vunpack.c.l.b16 %v640
        %v721 = vunpack.c.l.b16 %v641
        %v722 = vunpack.c.l.b16 %v642
        %v723 = vunpack.c.l.b16 %v643
        %v724 = vunpack.c.l.b16 %v644
        %v725 = vunpack.c.l.b16 %v645
        %v726 = vpack.c.b16 %v711, %v710
        %v727 = vpack.c.b16 %v713, %v712
        %v728 = vpack.c.b16 %v715, %v714
        %v729 = vpack.c.b16 %v717, %v716
        %v730 = vpack.c.b16 %v719, %v718
        %v731 = vpack.c.b16 %v721, %v720
        %v732 = vpack.c.b16 %v723, %v722
        %v733 = vpack.c.b16 %v725, %v724
        %742 = vmatpush.bf16.msra.mxu0 %v733
        %743 = vmatpush.bf16.msra.mxu0 %v732
        %744 = vmatpush.bf16.msra.mxu0 %v731
        %745 = vmatpush.bf16.msra.mxu0 %v730
        %746 = vmatpush.bf16.msra.mxu0 %v729
        %747 = vmatpush.bf16.msra.mxu0 %v728
        %748 = vmatpush.bf16.msra.mxu0 %v727
        %749 = vmatpush.bf16.msra.mxu0 %v726
        %750 = vmatmul.bf16.gmra.mxu0 %v678
        %v751 = vpop.f32.mrf.mxu0
        %v752 = vadd.f32 0.0, %v751
        %v753 = vpop.f32.mrf.mxu0
        %v754 = vadd.f32 0.0, %v753
        %755 = vmatmul.bf16.gmra.mxu0 %v679
        %v756 = vpop.f32.mrf.mxu0
        %v757 = vadd.f32 0.0, %v756
        %v758 = vpop.f32.mrf.mxu0
        %v759 = vadd.f32 0.0, %v758
        %760 = vmatmul.bf16.gmra.mxu0 %v680
        %v761 = vpop.f32.mrf.mxu0
        %v762 = vadd.f32 0.0, %v761
        %v763 = vpop.f32.mrf.mxu0
        %v764 = vadd.f32 0.0, %v763
        %765 = vmatmul.bf16.gmra.mxu0 %v681
        %v766 = vpop.f32.mrf.mxu0
        %v767 = vadd.f32 0.0, %v766
        %v768 = vpop.f32.mrf.mxu0
        %v769 = vadd.f32 0.0, %v768
        %770 = vmatmul.bf16.gmra.mxu0 %v682
        %v771 = vpop.f32.mrf.mxu0
        %v772 = vadd.f32 0.0, %v771
        %v773 = vpop.f32.mrf.mxu0
        %v774 = vadd.f32 0.0, %v773
        %775 = vmatmul.bf16.gmra.mxu0 %v683
        %v776 = vpop.f32.mrf.mxu0
        %v777 = vadd.f32 0.0, %v776
        %v778 = vpop.f32.mrf.mxu0
        %v779 = vadd.f32 0.0, %v778
        %780 = vmatmul.bf16.gmra.mxu0 %v684
        %v781 = vpop.f32.mrf.mxu0
        %v782 = vadd.f32 0.0, %v781
        %v783 = vpop.f32.mrf.mxu0
        %v784 = vadd.f32 0.0, %v783
        %785 = vmatmul.bf16.gmra.mxu0 %v685
        %v786 = vpop.f32.mrf.mxu0
        %v787 = vadd.f32 0.0, %v786
        %v788 = vpop.f32.mrf.mxu0
        %v789 = vadd.f32 0.0, %v788
        %790 = vdwg.mxu0
        %v791 = vadd.f32 %v598, %v752
        %v792 = vadd.f32 %v599, %v754
        %v793 = vadd.f32 %v600, %v757
        %v794 = vadd.f32 %v601, %v759
        %v795 = vadd.f32 %v602, %v762
        %v796 = vadd.f32 %v603, %v764
        %v797 = vadd.f32 %v604, %v767
        %v798 = vadd.f32 %v605, %v769
        %v799 = vadd.f32 %v606, %v772
        %v800 = vadd.f32 %v607, %v774
        %v801 = vadd.f32 %v608, %v777
        %v802 = vadd.f32 %v609, %v779
        %v803 = vadd.f32 %v610, %v782
        %v804 = vadd.f32 %v611, %v784
        %v805 = vadd.f32 %v612, %v787
        %v806 = vadd.f32 %v613, %v789
        %807 = vst [vmem:[#allocation2] sm:$0xff] %v791
        %808 = vst [vmem:[#allocation2 + $0x8] sm:$0xff] %v792
        %809 = vst [vmem:[#allocation2 + $0x10] sm:$0xff] %v793
        %810 = vst [vmem:[#allocation2 + $0x18] sm:$0xff] %v794
        %811 = vst [vmem:[#allocation2 + $0x20] sm:$0xff] %v795
        %812 = vst [vmem:[#allocation2 + $0x28] sm:$0xff] %v796
        %813 = vst [vmem:[#allocation2 + $0x30] sm:$0xff] %v797
        %814 = vst [vmem:[#allocation2 + $0x38] sm:$0xff] %v798
        %815 = vst [vmem:[#allocation2 + $0x40] sm:$0xff] %v799
        %816 = vst [vmem:[#allocation2 + $0x48] sm:$0xff] %v800
        %817 = vst [vmem:[#allocation2 + $0x50] sm:$0xff] %v801
        %818 = vst [vmem:[#allocation2 + $0x58] sm:$0xff] %v802
        %819 = vst [vmem:[#allocation2 + $0x60] sm:$0xff] %v803
        %820 = vst [vmem:[#allocation2 + $0x68] sm:$0xff] %v804
        %821 = vst [vmem:[#allocation2 + $0x70] sm:$0xff] %v805
        %822 = vst [vmem:[#allocation2 + $0x78] sm:$0xff] %v806
        %p823 = scmp.eq.s32.totalorder %s31, 1
        // Predicated region
        $region102: #{model_forward.3} parent=92 // pred_check
          %p824 = pneg %p823
        $region103: #{model_forward.3} parent=92 // pred_check_branch
          %826 = sbr.rel (%p824) target = $region105
        $region104: #{model_forward.3} parent=92 // pred_region
          %v827 = vld [vmem:[#allocation2] sm:$0xff]
          %v828 = vld [vmem:[#allocation2 + $0x8] sm:$0xff]
          %v829 = vld [vmem:[#allocation2 + $0x10] sm:$0xff]
          %v830 = vld [vmem:[#allocation2 + $0x18] sm:$0xff]
          %v831 = vld [vmem:[#allocation2 + $0x20] sm:$0xff]
          %v832 = vld [vmem:[#allocation2 + $0x28] sm:$0xff]
          %v833 = vld [vmem:[#allocation2 + $0x30] sm:$0xff]
          %v834 = vld [vmem:[#allocation2 + $0x38] sm:$0xff]
          %v835 = vld [vmem:[#allocation2 + $0x40] sm:$0xff]
          %v836 = vld [vmem:[#allocation2 + $0x48] sm:$0xff]
          %v837 = vld [vmem:[#allocation2 + $0x50] sm:$0xff]
          %v838 = vld [vmem:[#allocation2 + $0x58] sm:$0xff]
          %v839 = vld [vmem:[#allocation2 + $0x60] sm:$0xff]
          %v840 = vld [vmem:[#allocation2 + $0x68] sm:$0xff]
          %v841 = vld [vmem:[#allocation2 + $0x70] sm:$0xff]
          %v842 = vld [vmem:[#allocation2 + $0x78] sm:$0xff]
          %v843 = vpack.c.bf16 %v828, %v827
          %v844 = vpack.c.bf16 %v830, %v829
          %v845 = vpack.c.bf16 %v832, %v831
          %v846 = vpack.c.bf16 %v834, %v833
          %v847 = vpack.c.bf16 %v836, %v835
          %v848 = vpack.c.bf16 %v838, %v837
          %v849 = vpack.c.bf16 %v840, %v839
          %v850 = vpack.c.bf16 %v842, %v841
          %v851 = vld [vmem:[%s4] sm:$0xf]
          %v852 = vld [vmem:[%s4 + $0x4] sm:$0xf]
          %v853 = vld [vmem:[%s4 + $0x8] sm:$0xf]
          %v854 = vld [vmem:[%s4 + $0xc] sm:$0xf]
          %v855 = vld [vmem:[%s4 + $0x10] sm:$0xf]
          %v856 = vld [vmem:[%s4 + $0x14] sm:$0xf]
          %v857 = vld [vmem:[%s4 + $0x18] sm:$0xf]
          %v858 = vld [vmem:[%s4 + $0x1c] sm:$0xf]
          %v859 = vld [vmem:[%s4 + $0x20] sm:$0xf]
          %v860 = vld [vmem:[%s4 + $0x24] sm:$0xf]
          %v861 = vld [vmem:[%s4 + $0x28] sm:$0xf]
          %v862 = vld [vmem:[%s4 + $0x2c] sm:$0xf]
          %v863 = vld [vmem:[%s4 + $0x30] sm:$0xf]
          %v864 = vld [vmem:[%s4 + $0x34] sm:$0xf]
          %v865 = vld [vmem:[%s4 + $0x38] sm:$0xf]
          %v866 = vld [vmem:[%s4 + $0x3c] sm:$0xf]
          %v867 = vld [vmem:[%s563] sm:$0xf]
          %v868 = vld [vmem:[%s563 + $0x4] sm:$0xf]
          %v869 = vld [vmem:[%s563 + $0x8] sm:$0xf]
          %v870 = vld [vmem:[%s563 + $0xc] sm:$0xf]
          %v871 = vld [vmem:[%s563 + $0x10] sm:$0xf]
          %v872 = vld [vmem:[%s563 + $0x14] sm:$0xf]
          %v873 = vld [vmem:[%s563 + $0x18] sm:$0xf]
          %v874 = vld [vmem:[%s563 + $0x1c] sm:$0xf]
          %v875 = vld [vmem:[%s563 + $0x20] sm:$0xf]
          %v876 = vld [vmem:[%s563 + $0x24] sm:$0xf]
          %v877 = vld [vmem:[%s563 + $0x28] sm:$0xf]
          %v878 = vld [vmem:[%s563 + $0x2c] sm:$0xf]
          %v879 = vld [vmem:[%s563 + $0x30] sm:$0xf]
          %v880 = vld [vmem:[%s563 + $0x34] sm:$0xf]
          %v881 = vld [vmem:[%s563 + $0x38] sm:$0xf]
          %v882 = vld [vmem:[%s563 + $0x3c] sm:$0xf]
          %v883 = vld [vmem:[%s3] sm:$0xf]
          %v884 = vld [vmem:[%s3 + $0x4] sm:$0xf]
          %v885 = vld [vmem:[%s3 + $0x8] sm:$0xf]
          %v886 = vld [vmem:[%s3 + $0xc] sm:$0xf]
          %v887 = vld [vmem:[%s3 + $0x10] sm:$0xf]
          %v888 = vld [vmem:[%s3 + $0x14] sm:$0xf]
          %v889 = vld [vmem:[%s3 + $0x18] sm:$0xf]
          %v890 = vld [vmem:[%s3 + $0x1c] sm:$0xf]
          %v891 = vld [vmem:[%s3 + $0x20] sm:$0xf]
          %v892 = vld [vmem:[%s3 + $0x24] sm:$0xf]
          %v893 = vld [vmem:[%s3 + $0x28] sm:$0xf]
          %v894 = vld [vmem:[%s3 + $0x2c] sm:$0xf]
          %v895 = vld [vmem:[%s3 + $0x30] sm:$0xf]
          %v896 = vld [vmem:[%s3 + $0x34] sm:$0xf]
          %v897 = vld [vmem:[%s3 + $0x38] sm:$0xf]
          %v898 = vld [vmem:[%s3 + $0x3c] sm:$0xf]
          %v915 = vunpack.c.l.b16 %v867
          %v916 = vunpack.c.l.b16 %v868
          %v917 = vunpack.c.l.b16 %v869
          %v918 = vunpack.c.l.b16 %v870
          %v919 = vunpack.c.l.b16 %v871
          %v920 = vunpack.c.l.b16 %v872
          %v921 = vunpack.c.l.b16 %v873
          %v922 = vunpack.c.l.b16 %v874
          %v923 = vunpack.c.l.b16 %v875
          %v924 = vunpack.c.l.b16 %v876
          %v925 = vunpack.c.l.b16 %v877
          %v926 = vunpack.c.l.b16 %v878
          %v927 = vunpack.c.l.b16 %v879
          %v928 = vunpack.c.l.b16 %v880
          %v929 = vunpack.c.l.b16 %v881
          %v930 = vunpack.c.l.b16 %v882
          %v931 = vpack.c.b16 %v916, %v915
          %v932 = vpack.c.b16 %v918, %v917
          %v933 = vpack.c.b16 %v920, %v919
          %v934 = vpack.c.b16 %v922, %v921
          %v935 = vpack.c.b16 %v924, %v923
          %v936 = vpack.c.b16 %v926, %v925
          %v937 = vpack.c.b16 %v928, %v927
          %v938 = vpack.c.b16 %v930, %v929
          %v963 = vunpack.c.l.b16 %v883
          %v964 = vunpack.c.l.b16 %v884
          %v965 = vunpack.c.l.b16 %v885
          %v966 = vunpack.c.l.b16 %v886
          %v967 = vunpack.c.l.b16 %v887
          %v968 = vunpack.c.l.b16 %v888
          %v969 = vunpack.c.l.b16 %v889
          %v970 = vunpack.c.l.b16 %v890
          %v971 = vunpack.c.l.b16 %v891
          %v972 = vunpack.c.l.b16 %v892
          %v973 = vunpack.c.l.b16 %v893
          %v974 = vunpack.c.l.b16 %v894
          %v975 = vunpack.c.l.b16 %v895
          %v976 = vunpack.c.l.b16 %v896
          %v977 = vunpack.c.l.b16 %v897
          %v978 = vunpack.c.l.b16 %v898
          %v979 = vpack.c.b16 %v964, %v963
          %v980 = vpack.c.b16 %v966, %v965
          %v981 = vpack.c.b16 %v968, %v967
          %v982 = vpack.c.b16 %v970, %v969
          %v983 = vpack.c.b16 %v972, %v971
          %v984 = vpack.c.b16 %v974, %v973
          %v985 = vpack.c.b16 %v976, %v975
          %v986 = vpack.c.b16 %v978, %v977
          %995 = vmatpush.bf16.msra.mxu0 %v986
          %996 = vmatpush.bf16.msra.mxu0 %v985
          %997 = vmatpush.bf16.msra.mxu0 %v984
          %998 = vmatpush.bf16.msra.mxu0 %v983
          %999 = vmatpush.bf16.msra.mxu0 %v982
          %1000 = vmatpush.bf16.msra.mxu0 %v981
          %1001 = vmatpush.bf16.msra.mxu0 %v980
          %1002 = vmatpush.bf16.msra.mxu0 %v979
          %1003 = vmatmul.bf16.gmra.mxu0 %v931
          %v1004 = vpop.f32.mrf.mxu0
          %v1005 = vadd.f32 0.0, %v1004
          %v1006 = vpop.f32.mrf.mxu0
          %v1007 = vadd.f32 0.0, %v1006
          %1008 = vmatmul.bf16.gmra.mxu0 %v932
          %v1009 = vpop.f32.mrf.mxu0
          %v1010 = vadd.f32 0.0, %v1009
          %v1011 = vpop.f32.mrf.mxu0
          %v1012 = vadd.f32 0.0, %v1011
          %1013 = vmatmul.bf16.gmra.mxu0 %v933
          %v1014 = vpop.f32.mrf.mxu0
          %v1015 = vadd.f32 0.0, %v1014
          %v1016 = vpop.f32.mrf.mxu0
          %v1017 = vadd.f32 0.0, %v1016
          %1018 = vmatmul.bf16.gmra.mxu0 %v934
          %v1019 = vpop.f32.mrf.mxu0
          %v1020 = vadd.f32 0.0, %v1019
          %v1021 = vpop.f32.mrf.mxu0
          %v1022 = vadd.f32 0.0, %v1021
          %1023 = vmatmul.bf16.gmra.mxu0 %v935
          %v1024 = vpop.f32.mrf.mxu0
          %v1025 = vadd.f32 0.0, %v1024
          %v1026 = vpop.f32.mrf.mxu0
          %v1027 = vadd.f32 0.0, %v1026
          %1028 = vmatmul.bf16.gmra.mxu0 %v936
          %v1029 = vpop.f32.mrf.mxu0
          %v1030 = vadd.f32 0.0, %v1029
          %v1031 = vpop.f32.mrf.mxu0
          %v1032 = vadd.f32 0.0, %v1031
          %1033 = vmatmul.bf16.gmra.mxu0 %v937
          %v1034 = vpop.f32.mrf.mxu0
          %v1035 = vadd.f32 0.0, %v1034
          %v1036 = vpop.f32.mrf.mxu0
          %v1037 = vadd.f32 0.0, %v1036
          %1038 = vmatmul.bf16.gmra.mxu0 %v938
          %v1039 = vpop.f32.mrf.mxu0
          %v1040 = vadd.f32 0.0, %v1039
          %v1041 = vpop.f32.mrf.mxu0
          %v1042 = vadd.f32 0.0, %v1041
          %1043 = vdwg.mxu0
          %v1060 = vunpack.c.l.b16 %v851
          %v1061 = vunpack.c.l.b16 %v852
          %v1062 = vunpack.c.l.b16 %v853
          %v1063 = vunpack.c.l.b16 %v854
          %v1064 = vunpack.c.l.b16 %v855
          %v1065 = vunpack.c.l.b16 %v856
          %v1066 = vunpack.c.l.b16 %v857
          %v1067 = vunpack.c.l.b16 %v858
          %v1068 = vunpack.c.l.b16 %v859
          %v1069 = vunpack.c.l.b16 %v860
          %v1070 = vunpack.c.l.b16 %v861
          %v1071 = vunpack.c.l.b16 %v862
          %v1072 = vunpack.c.l.b16 %v863
          %v1073 = vunpack.c.l.b16 %v864
          %v1074 = vunpack.c.l.b16 %v865
          %v1075 = vunpack.c.l.b16 %v866
          %v1076 = vpack.c.b16 %v1061, %v1060
          %v1077 = vpack.c.b16 %v1063, %v1062
          %v1078 = vpack.c.b16 %v1065, %v1064
          %v1079 = vpack.c.b16 %v1067, %v1066
          %v1080 = vpack.c.b16 %v1069, %v1068
          %v1081 = vpack.c.b16 %v1071, %v1070
          %v1082 = vpack.c.b16 %v1073, %v1072
          %v1083 = vpack.c.b16 %v1075, %v1074
          %1092 = vmatpush.bf16.msra.mxu0 %v1083
          %1093 = vmatpush.bf16.msra.mxu0 %v1082
          %1094 = vmatpush.bf16.msra.mxu0 %v1081
          %1095 = vmatpush.bf16.msra.mxu0 %v1080
          %1096 = vmatpush.bf16.msra.mxu0 %v1079
          %1097 = vmatpush.bf16.msra.mxu0 %v1078
          %1098 = vmatpush.bf16.msra.mxu0 %v1077
          %1099 = vmatpush.bf16.msra.mxu0 %v1076
          %1100 = vmatmul.bf16.gmra.mxu0 %v843
          %v1101 = vpop.f32.mrf.mxu0
          %v1102 = vadd.f32 %v1005, %v1101
          %v1103 = vpop.f32.mrf.mxu0
          %v1104 = vadd.f32 %v1007, %v1103
          %1105 = vmatmul.bf16.gmra.mxu0 %v844
          %v1106 = vpop.f32.mrf.mxu0
          %v1107 = vadd.f32 %v1010, %v1106
          %v1108 = vpop.f32.mrf.mxu0
          %v1109 = vadd.f32 %v1012, %v1108
          %1110 = vmatmul.bf16.gmra.mxu0 %v845
          %v1111 = vpop.f32.mrf.mxu0
          %v1112 = vadd.f32 %v1015, %v1111
          %v1113 = vpop.f32.mrf.mxu0
          %v1114 = vadd.f32 %v1017, %v1113
          %1115 = vmatmul.bf16.gmra.mxu0 %v846
          %v1116 = vpop.f32.mrf.mxu0
          %v1117 = vadd.f32 %v1020, %v1116
          %v1118 = vpop.f32.mrf.mxu0
          %v1119 = vadd.f32 %v1022, %v1118
          %1120 = vmatmul.bf16.gmra.mxu0 %v847
          %v1121 = vpop.f32.mrf.mxu0
          %v1122 = vadd.f32 %v1025, %v1121
          %v1123 = vpop.f32.mrf.mxu0
          %v1124 = vadd.f32 %v1027, %v1123
          %1125 = vmatmul.bf16.gmra.mxu0 %v848
          %v1126 = vpop.f32.mrf.mxu0
          %v1127 = vadd.f32 %v1030, %v1126
          %v1128 = vpop.f32.mrf.mxu0
          %v1129 = vadd.f32 %v1032, %v1128
          %1130 = vmatmul.bf16.gmra.mxu0 %v849
          %v1131 = vpop.f32.mrf.mxu0
          %v1132 = vadd.f32 %v1035, %v1131
          %v1133 = vpop.f32.mrf.mxu0
          %v1134 = vadd.f32 %v1037, %v1133
          %1135 = vmatmul.bf16.gmra.mxu0 %v850
          %v1136 = vpop.f32.mrf.mxu0
          %v1137 = vadd.f32 %v1040, %v1136
          %v1138 = vpop.f32.mrf.mxu0
          %v1139 = vadd.f32 %v1042, %v1138
          %1140 = vdwg.mxu0
          %v1141 = vld [vmem:[%s5] sm:$0x1]
          %v1143 = vperm.slane %v1141, 0
          %v1145 = vadd.f32 %v1102, %v1143
          %v1146 = vadd.f32 %v1104, %v1143
          %v1147 = vadd.f32 %v1107, %v1143
          %v1148 = vadd.f32 %v1109, %v1143
          %v1149 = vadd.f32 %v1112, %v1143
          %v1150 = vadd.f32 %v1114, %v1143
          %v1151 = vadd.f32 %v1117, %v1143
          %v1152 = vadd.f32 %v1119, %v1143
          %v1153 = vadd.f32 %v1122, %v1143
          %v1154 = vadd.f32 %v1124, %v1143
          %v1155 = vadd.f32 %v1127, %v1143
          %v1156 = vadd.f32 %v1129, %v1143
          %v1157 = vadd.f32 %v1132, %v1143
          %v1158 = vadd.f32 %v1134, %v1143
          %v1159 = vadd.f32 %v1137, %v1143
          %v1160 = vadd.f32 %v1139, %v1143
          %v1161 = vpack.c.bf16 %v1145, %v1145
          %v1162 = vpack.c.bf16 %v1146, %v1146
          %v1163 = vpack.c.bf16 %v1147, %v1147
          %v1164 = vpack.c.bf16 %v1148, %v1148
          %v1165 = vpack.c.bf16 %v1149, %v1149
          %v1166 = vpack.c.bf16 %v1150, %v1150
          %v1167 = vpack.c.bf16 %v1151, %v1151
          %v1168 = vpack.c.bf16 %v1152, %v1152
          %v1169 = vpack.c.bf16 %v1153, %v1153
          %v1170 = vpack.c.bf16 %v1154, %v1154
          %v1171 = vpack.c.bf16 %v1155, %v1155
          %v1172 = vpack.c.bf16 %v1156, %v1156
          %v1173 = vpack.c.bf16 %v1157, %v1157
          %v1174 = vpack.c.bf16 %v1158, %v1158
          %v1175 = vpack.c.bf16 %v1159, %v1159
          %v1176 = vpack.c.bf16 %v1160, %v1160
          %1177 = vst [vmem:[%s537] sm:$0xf] %v1161
          %1178 = vst [vmem:[%s537 + $0x4] sm:$0xf] %v1162
          %1179 = vst [vmem:[%s537 + $0x8] sm:$0xf] %v1163
          %1180 = vst [vmem:[%s537 + $0xc] sm:$0xf] %v1164
          %1181 = vst [vmem:[%s537 + $0x10] sm:$0xf] %v1165
          %1182 = vst [vmem:[%s537 + $0x14] sm:$0xf] %v1166
          %1183 = vst [vmem:[%s537 + $0x18] sm:$0xf] %v1167
          %1184 = vst [vmem:[%s537 + $0x1c] sm:$0xf] %v1168
          %1185 = vst [vmem:[%s537 + $0x20] sm:$0xf] %v1169
          %1186 = vst [vmem:[%s537 + $0x24] sm:$0xf] %v1170
          %1187 = vst [vmem:[%s537 + $0x28] sm:$0xf] %v1171
          %1188 = vst [vmem:[%s537 + $0x2c] sm:$0xf] %v1172
          %1189 = vst [vmem:[%s537 + $0x30] sm:$0xf] %v1173
          %1190 = vst [vmem:[%s537 + $0x34] sm:$0xf] %v1174
          %1191 = vst [vmem:[%s537 + $0x38] sm:$0xf] %v1175
          %1192 = vst [vmem:[%s537 + $0x3c] sm:$0xf] %v1176
          %v1193 = vld [vmem:[%s6] sm:$0xf]
          %v1194 = vld [vmem:[%s6 + $0x4] sm:$0xf]
          %v1195 = vld [vmem:[%s6 + $0x8] sm:$0xf]
          %v1196 = vld [vmem:[%s6 + $0xc] sm:$0xf]
          %v1197 = vld [vmem:[%s6 + $0x10] sm:$0xf]
          %v1198 = vld [vmem:[%s6 + $0x14] sm:$0xf]
          %v1199 = vld [vmem:[%s6 + $0x18] sm:$0xf]
          %v1200 = vld [vmem:[%s6 + $0x1c] sm:$0xf]
          %v1201 = vld [vmem:[%s6 + $0x20] sm:$0xf]
          %v1202 = vld [vmem:[%s6 + $0x24] sm:$0xf]
          %v1203 = vld [vmem:[%s6 + $0x28] sm:$0xf]
          %v1204 = vld [vmem:[%s6 + $0x2c] sm:$0xf]
          %v1205 = vld [vmem:[%s6 + $0x30] sm:$0xf]
          %v1206 = vld [vmem:[%s6 + $0x34] sm:$0xf]
          %v1207 = vld [vmem:[%s6 + $0x38] sm:$0xf]
          %v1208 = vld [vmem:[%s6 + $0x3c] sm:$0xf]
          %v1209 = vld [vmem:[%s8] sm:$0x1]
          %v1211 = vperm.slane %v1209, 0
          %v1229 = vunpack.c.l.b16 %v1161
          %v1230 = vunpack.c.l.b16 %v1162
          %v1231 = vunpack.c.l.b16 %v1163
          %v1232 = vunpack.c.l.b16 %v1164
          %v1233 = vunpack.c.l.b16 %v1165
          %v1234 = vunpack.c.l.b16 %v1166
          %v1235 = vunpack.c.l.b16 %v1167
          %v1236 = vunpack.c.l.b16 %v1168
          %v1237 = vunpack.c.l.b16 %v1169
          %v1238 = vunpack.c.l.b16 %v1170
          %v1239 = vunpack.c.l.b16 %v1171
          %v1240 = vunpack.c.l.b16 %v1172
          %v1241 = vunpack.c.l.b16 %v1173
          %v1242 = vunpack.c.l.b16 %v1174
          %v1243 = vunpack.c.l.b16 %v1175
          %v1244 = vunpack.c.l.b16 %v1176
          %v1245 = vpack.c.b16 %v1230, %v1229
          %v1246 = vpack.c.b16 %v1232, %v1231
          %v1247 = vpack.c.b16 %v1234, %v1233
          %v1248 = vpack.c.b16 %v1236, %v1235
          %v1249 = vpack.c.b16 %v1238, %v1237
          %v1250 = vpack.c.b16 %v1240, %v1239
          %v1251 = vpack.c.b16 %v1242, %v1241
          %v1252 = vpack.c.b16 %v1244, %v1243
          %v1277 = vunpack.c.l.b16 %v1193
          %v1278 = vunpack.c.l.b16 %v1194
          %v1279 = vunpack.c.l.b16 %v1195
          %v1280 = vunpack.c.l.b16 %v1196
          %v1281 = vunpack.c.l.b16 %v1197
          %v1282 = vunpack.c.l.b16 %v1198
          %v1283 = vunpack.c.l.b16 %v1199
          %v1284 = vunpack.c.l.b16 %v1200
          %v1285 = vunpack.c.l.b16 %v1201
          %v1286 = vunpack.c.l.b16 %v1202
          %v1287 = vunpack.c.l.b16 %v1203
          %v1288 = vunpack.c.l.b16 %v1204
          %v1289 = vunpack.c.l.b16 %v1205
          %v1290 = vunpack.c.l.b16 %v1206
          %v1291 = vunpack.c.l.b16 %v1207
          %v1292 = vunpack.c.l.b16 %v1208
          %v1293 = vpack.c.b16 %v1278, %v1277
          %v1294 = vpack.c.b16 %v1280, %v1279
          %v1295 = vpack.c.b16 %v1282, %v1281
          %v1296 = vpack.c.b16 %v1284, %v1283
          %v1297 = vpack.c.b16 %v1286, %v1285
          %v1298 = vpack.c.b16 %v1288, %v1287
          %v1299 = vpack.c.b16 %v1290, %v1289
          %v1300 = vpack.c.b16 %v1292, %v1291
          %1309 = vmatpush.bf16.msra.mxu0 %v1300
          %1310 = vmatpush.bf16.msra.mxu0 %v1299
          %1311 = vmatpush.bf16.msra.mxu0 %v1298
          %1312 = vmatpush.bf16.msra.mxu0 %v1297
          %1313 = vmatpush.bf16.msra.mxu0 %v1296
          %1314 = vmatpush.bf16.msra.mxu0 %v1295
          %1315 = vmatpush.bf16.msra.mxu0 %v1294
          %1316 = vmatpush.bf16.msra.mxu0 %v1293
          %1317 = vmatmul.bf16.gmra.mxu0 %v1245
          %v1318 = vpop.f32.mrf.mxu0
          %v1319 = vadd.f32 %v1211, %v1318
          %v1320 = vpop.f32.mrf.mxu0
          %v1321 = vadd.f32 %v1211, %v1320
          %1322 = vmatmul.bf16.gmra.mxu0 %v1246
          %v1323 = vpop.f32.mrf.mxu0
          %v1324 = vadd.f32 %v1211, %v1323
          %v1325 = vpop.f32.mrf.mxu0
          %v1326 = vadd.f32 %v1211, %v1325
          %1327 = vmatmul.bf16.gmra.mxu0 %v1247
          %v1328 = vpop.f32.mrf.mxu0
          %v1329 = vadd.f32 %v1211, %v1328
          %v1330 = vpop.f32.mrf.mxu0
          %v1331 = vadd.f32 %v1211, %v1330
          %1332 = vmatmul.bf16.gmra.mxu0 %v1248
          %v1333 = vpop.f32.mrf.mxu0
          %v1334 = vadd.f32 %v1211, %v1333
          %v1335 = vpop.f32.mrf.mxu0
          %v1336 = vadd.f32 %v1211, %v1335
          %1337 = vmatmul.bf16.gmra.mxu0 %v1249
          %v1338 = vpop.f32.mrf.mxu0
          %v1339 = vadd.f32 %v1211, %v1338
          %v1340 = vpop.f32.mrf.mxu0
          %v1341 = vadd.f32 %v1211, %v1340
          %1342 = vmatmul.bf16.gmra.mxu0 %v1250
          %v1343 = vpop.f32.mrf.mxu0
          %v1344 = vadd.f32 %v1211, %v1343
          %v1345 = vpop.f32.mrf.mxu0
          %v1346 = vadd.f32 %v1211, %v1345
          %1347 = vmatmul.bf16.gmra.mxu0 %v1251
          %v1348 = vpop.f32.mrf.mxu0
          %v1349 = vadd.f32 %v1211, %v1348
          %v1350 = vpop.f32.mrf.mxu0
          %v1351 = vadd.f32 %v1211, %v1350
          %1352 = vmatmul.bf16.gmra.mxu0 %v1252
          %v1353 = vpop.f32.mrf.mxu0
          %v1354 = vadd.f32 %v1211, %v1353
          %v1355 = vpop.f32.mrf.mxu0
          %v1356 = vadd.f32 %v1211, %v1355
          %1357 = vdwg.mxu0
          %1358 = vst [vmem:[%s570] sm:$0xff] %v1319
          %1359 = vst [vmem:[%s570 + $0x8] sm:$0xff] %v1321
          %1360 = vst [vmem:[%s570 + $0x10] sm:$0xff] %v1324
          %1361 = vst [vmem:[%s570 + $0x18] sm:$0xff] %v1326
          %1362 = vst [vmem:[%s570 + $0x20] sm:$0xff] %v1329
          %1363 = vst [vmem:[%s570 + $0x28] sm:$0xff] %v1331
          %1364 = vst [vmem:[%s570 + $0x30] sm:$0xff] %v1334
          %1365 = vst [vmem:[%s570 + $0x38] sm:$0xff] %v1336
          %1366 = vst [vmem:[%s570 + $0x40] sm:$0xff] %v1339
          %1367 = vst [vmem:[%s570 + $0x48] sm:$0xff] %v1341
          %1368 = vst [vmem:[%s570 + $0x50] sm:$0xff] %v1344
          %1369 = vst [vmem:[%s570 + $0x58] sm:$0xff] %v1346
          %1370 = vst [vmem:[%s570 + $0x60] sm:$0xff] %v1349
          %1371 = vst [vmem:[%s570 + $0x68] sm:$0xff] %v1351
          %1372 = vst [vmem:[%s570 + $0x70] sm:$0xff] %v1354
          %1373 = vst [vmem:[%s570 + $0x78] sm:$0xff] %v1356
          %v1374 = vld [vmem:[%s7] sm:$0xf]
          %v1375 = vld [vmem:[%s7 + $0x4] sm:$0xf]
          %v1376 = vld [vmem:[%s7 + $0x8] sm:$0xf]
          %v1377 = vld [vmem:[%s7 + $0xc] sm:$0xf]
          %v1378 = vld [vmem:[%s7 + $0x10] sm:$0xf]
          %v1379 = vld [vmem:[%s7 + $0x14] sm:$0xf]
          %v1380 = vld [vmem:[%s7 + $0x18] sm:$0xf]
          %v1381 = vld [vmem:[%s7 + $0x1c] sm:$0xf]
          %v1382 = vld [vmem:[%s7 + $0x20] sm:$0xf]
          %v1383 = vld [vmem:[%s7 + $0x24] sm:$0xf]
          %v1384 = vld [vmem:[%s7 + $0x28] sm:$0xf]
          %v1385 = vld [vmem:[%s7 + $0x2c] sm:$0xf]
          %v1386 = vld [vmem:[%s7 + $0x30] sm:$0xf]
          %v1387 = vld [vmem:[%s7 + $0x34] sm:$0xf]
          %v1388 = vld [vmem:[%s7 + $0x38] sm:$0xf]
          %v1389 = vld [vmem:[%s7 + $0x3c] sm:$0xf]
          %v1406 = vunpack.c.l.b16 %v1374
          %v1407 = vunpack.c.l.b16 %v1375
          %v1408 = vunpack.c.l.b16 %v1376
          %v1409 = vunpack.c.l.b16 %v1377
          %v1410 = vunpack.c.l.b16 %v1378
          %v1411 = vunpack.c.l.b16 %v1379
          %v1412 = vunpack.c.l.b16 %v1380
          %v1413 = vunpack.c.l.b16 %v1381
          %v1414 = vunpack.c.l.b16 %v1382
          %v1415 = vunpack.c.l.b16 %v1383
          %v1416 = vunpack.c.l.b16 %v1384
          %v1417 = vunpack.c.l.b16 %v1385
          %v1418 = vunpack.c.l.b16 %v1386
          %v1419 = vunpack.c.l.b16 %v1387
          %v1420 = vunpack.c.l.b16 %v1388
          %v1421 = vunpack.c.l.b16 %v1389
          %v1422 = vpack.c.b16 %v1407, %v1406
          %v1423 = vpack.c.b16 %v1409, %v1408
          %v1424 = vpack.c.b16 %v1411, %v1410
          %v1425 = vpack.c.b16 %v1413, %v1412
          %v1426 = vpack.c.b16 %v1415, %v1414
          %v1427 = vpack.c.b16 %v1417, %v1416
          %v1428 = vpack.c.b16 %v1419, %v1418
          %v1429 = vpack.c.b16 %v1421, %v1420
          %1438 = vmatpush.bf16.msra.mxu0 %v1429
          %1439 = vmatpush.bf16.msra.mxu0 %v1428
          %1440 = vmatpush.bf16.msra.mxu0 %v1427
          %1441 = vmatpush.bf16.msra.mxu0 %v1426
          %1442 = vmatpush.bf16.msra.mxu0 %v1425
          %1443 = vmatpush.bf16.msra.mxu0 %v1424
          %1444 = vmatpush.bf16.msra.mxu0 %v1423
          %1445 = vmatpush.bf16.msra.mxu0 %v1422
          %1446 = vmatmul.bf16.gmra.mxu0 %v1245
          %v1447 = vpop.f32.mrf.mxu0
          %v1448 = vadd.f32 0.0, %v1447
          %v1449 = vpop.f32.mrf.mxu0
          %v1450 = vadd.f32 0.0, %v1449
          %1451 = vmatmul.bf16.gmra.mxu0 %v1246
          %v1452 = vpop.f32.mrf.mxu0
          %v1453 = vadd.f32 0.0, %v1452
          %v1454 = vpop.f32.mrf.mxu0
          %v1455 = vadd.f32 0.0, %v1454
          %1456 = vmatmul.bf16.gmra.mxu0 %v1247
          %v1457 = vpop.f32.mrf.mxu0
          %v1458 = vadd.f32 0.0, %v1457
          %v1459 = vpop.f32.mrf.mxu0
          %v1460 = vadd.f32 0.0, %v1459
          %1461 = vmatmul.bf16.gmra.mxu0 %v1248
          %v1462 = vpop.f32.mrf.mxu0
          %v1463 = vadd.f32 0.0, %v1462
          %v1464 = vpop.f32.mrf.mxu0
          %v1465 = vadd.f32 0.0, %v1464
          %1466 = vmatmul.bf16.gmra.mxu0 %v1249
          %v1467 = vpop.f32.mrf.mxu0
          %v1468 = vadd.f32 0.0, %v1467
          %v1469 = vpop.f32.mrf.mxu0
          %v1470 = vadd.f32 0.0, %v1469
          %1471 = vmatmul.bf16.gmra.mxu0 %v1250
          %v1472 = vpop.f32.mrf.mxu0
          %v1473 = vadd.f32 0.0, %v1472
          %v1474 = vpop.f32.mrf.mxu0
          %v1475 = vadd.f32 0.0, %v1474
          %1476 = vmatmul.bf16.gmra.mxu0 %v1251
          %v1477 = vpop.f32.mrf.mxu0
          %v1478 = vadd.f32 0.0, %v1477
          %v1479 = vpop.f32.mrf.mxu0
          %v1480 = vadd.f32 0.0, %v1479
          %1481 = vmatmul.bf16.gmra.mxu0 %v1252
          %v1482 = vpop.f32.mrf.mxu0
          %v1483 = vadd.f32 0.0, %v1482
          %v1484 = vpop.f32.mrf.mxu0
          %v1485 = vadd.f32 0.0, %v1484
          %1486 = vdwg.mxu0
          %1487 = vst [vmem:[%s576] sm:$0xff] %v1448
          %1488 = vst [vmem:[%s576 + $0x8] sm:$0xff] %v1450
          %1489 = vst [vmem:[%s576 + $0x10] sm:$0xff] %v1453
          %1490 = vst [vmem:[%s576 + $0x18] sm:$0xff] %v1455
          %1491 = vst [vmem:[%s576 + $0x20] sm:$0xff] %v1458
          %1492 = vst [vmem:[%s576 + $0x28] sm:$0xff] %v1460
          %1493 = vst [vmem:[%s576 + $0x30] sm:$0xff] %v1463
          %1494 = vst [vmem:[%s576 + $0x38] sm:$0xff] %v1465
          %1495 = vst [vmem:[%s576 + $0x40] sm:$0xff] %v1468
          %1496 = vst [vmem:[%s576 + $0x48] sm:$0xff] %v1470
          %1497 = vst [vmem:[%s576 + $0x50] sm:$0xff] %v1473
          %1498 = vst [vmem:[%s576 + $0x58] sm:$0xff] %v1475
          %1499 = vst [vmem:[%s576 + $0x60] sm:$0xff] %v1478
          %1500 = vst [vmem:[%s576 + $0x68] sm:$0xff] %v1480
          %1501 = vst [vmem:[%s576 + $0x70] sm:$0xff] %v1483
          %1502 = vst [vmem:[%s576 + $0x78] sm:$0xff] %v1485
        $region105: #{model_forward.3} parent=92 // pred_fallthru
          _
        %s1503 = sand.u32 %s252, 1
        %s1504 = scalar_lea.sflag [#allocation5], %s1503
        %s1505 = sand.u32 %s252, 1
        %s1506 = smul.addr %s1505, 64
        %s1507 = scalar_lea.vmem [#allocation4], %s1506
        %s1508 = smul.u32 16, %s30
        %p1509 = scmp.lt.s32.totalorder %s1508, 31
        %s1510 = scalar_select %p1509, %s1508, 31
        %s1511 = smul.addr %s1510, 8
        %s1512 = scalar_lea.vmem %s10, %s1511
        %s1513 = smul.u32 16, %s30
        %p1514 = scmp.lt.s32.totalorder %s1513, 31
        %s1515 = scalar_select %p1514, %s1513, 31
        %s1516 = smul.addr %s1515, 8
        %s1517 = scalar_lea.vmem %s11, %s1516
        // Predicated region
        $region106: #{model_forward.3} parent=92 // pred_check
          %p1518 = pneg %p262
        $region107: #{model_forward.3} parent=92 // pred_check_branch
          %1520 = sbr.rel (%p1518) target = $region109
        $region108: #{model_forward.3} parent=92 // pred_region
          %s1521 = smul.u32 16, %s30
          %1523 = vsyncadd %s1504, 0
          %s1524 = smul.addr %s1521, 4
          %s1525 = scalar_lea.hbm %s9, %s1524
          %s1526 = sshll.u32 %s1507, 4
          %s1527 = int_to_ptr.vmem [resolvable:$true] %s1526
          %s1528 = sshll.u32 %s1525, 4
          %s1529 = int_to_ptr.hbm [resolvable:$true] %s1528
          %1534 = dma.vmem_to_hbm [thread:$0]  %s1527, 1024, %s1529, %s1504, 64, 64, 4
        $region109: #{model_forward.3} parent=92 // pred_fallthru
          _
        // Predicated region
        $region110: #{model_forward.3} parent=92 // pred_check
          %p1535 = pneg %p288
        $region111: #{model_forward.3} parent=92 // pred_check_branch
          %1537 = sbr.rel (%p1535) target = $region113
        $region112: #{model_forward.3} parent=92 // pred_region
          %s1538 = smul.u32 16, %s30
        $region113: #{model_forward.3} parent=92 // pred_fallthru
          _
        // Predicated region
        $region114: #{model_forward.3} parent=92 // pred_check
          %p1539 = pneg %p314
        $region115: #{model_forward.3} parent=92 // pred_check_branch
          %1541 = sbr.rel (%p1539) target = $region117
        $region116: #{model_forward.3} parent=92 // pred_region
          %s1542 = smul.u32 16, %s30
        $region117: #{model_forward.3} parent=92 // pred_fallthru
          _
      $region93: #{model_forward.3} parent=5 // pred_fallthru
        _
      %p1543 = scmp.le.s32.totalorder 2, %s21
      // Predicated region
      $region118: #{model_forward.3} parent=5 // pred_check
        %p1544 = pneg %p1543
      $region119: #{model_forward.3} parent=5 // pred_check_branch
        %1546 = sbr.rel (%p1544) target = $region121
      $region120: #{model_forward.3} parent=5 // pred_region
        %s1547 = ssub.s32 %s21, 2
        // Predicated region
        $region122: #{model_forward.3} parent=120 // pred_check
          %p1548 = pneg %p268
        $region123: #{model_forward.3} parent=120 // pred_check_branch
          %1550 = sbr.rel (%p1548) target = $region125
        $region124: #{model_forward.3} parent=120 // pred_region
          %s1551 = sand.u32 %s253, 1
          %s1552 = scalar_lea.sflag [#allocation5], %s1551
          %s1553 = sand.u32 %s253, 1
          %s1554 = smul.addr %s1553, 64
          %s1555 = scalar_lea.vmem [#allocation4], %s1554
          %1557 = dma.done %s1552, 1024
        $region125: #{model_forward.3} parent=120 // pred_fallthru
          _
        // Predicated region
        $region126: #{model_forward.3} parent=120 // pred_check
          %p1558 = pneg %p294
        $region127: #{model_forward.3} parent=120 // pred_check_branch
          %1560 = sbr.rel (%p1558) target = $region129
        $region128: #{model_forward.3} parent=120 // pred_region
          %s1561 = smul.u32 16, %s32
          %p1562 = scmp.lt.s32.totalorder %s1561, 31
          %s1563 = scalar_select %p1562, %s1561, 31
          %s1564 = smul.addr %s1563, 8
          %s1565 = scalar_lea.vmem %s10, %s1564
        $region129: #{model_forward.3} parent=120 // pred_fallthru
          _
        // Predicated region
        $region130: #{model_forward.3} parent=120 // pred_check
          %p1566 = pneg %p320
        $region131: #{model_forward.3} parent=120 // pred_check_branch
          %1568 = sbr.rel (%p1566) target = $region133
        $region132: #{model_forward.3} parent=120 // pred_region
          %s1569 = smul.u32 16, %s32
          %p1570 = scmp.lt.s32.totalorder %s1569, 31
          %s1571 = scalar_select %p1570, %s1569, 31
          %s1572 = smul.addr %s1571, 8
          %s1573 = scalar_lea.vmem %s11, %s1572
        $region133: #{model_forward.3} parent=120 // pred_fallthru
          _
      $region121: #{model_forward.3} parent=5 // pred_fallthru
        _
    $region6: #{model_forward.3} parent=1 // loop_footer
      %s25 = sadd.s32 1, %s21
    $region7: #{model_forward.3} parent=1 // loop_footer_branch
      %20 = sbr.rel target = $region3
    $region8: #{model_forward.3} parent=1 // loop_exit
      _
    %1574 = vsyncpa [#allocation5], 1
    %s1575 = scalar_lea.sflag [#allocation5], 1
    %1576 = vsyncpa %s1575, 1

</llo_original>
